<compile_context>
chip_gen: v6e
topology: v6e:2x2x1
jax: 0.10.0
libtpu: 0.0.40
codegen_flags: <defaults>
</compile_context>

<pallas_src>
import numpy as np
import jax
import jax.numpy as jnp
from jax import lax
from jax.experimental import pallas as pl
from jax.experimental.pallas import tpu as pltpu


def _make_decoder_kernel(H, W, T, Cin, Ce, Cout, A):
    HW = H * W
    Ctot = Ce + Cin + Cout      # conv input channels: cat(context, X, H_prev)
    Cres = Cout + Ce + Cin      # skip-connection output channels

    # flat-index shift for each 3x3 tap (dy, dx), dy/dx in {-1, 0, 1}
    tap_shifts = [(k // 3 - 1) * W + (k % 3 - 1) for k in range(9)]

    def shift_flat(a, s):
        # b[:, f] = a[:, (f + s) % HW]  -- lane-axis rotation with guaranteed semantics
        # (the boundary wrap is zeroed afterwards by the per-tap mask).
        sm = s % HW
        if sm == 0:
            return a
        return jnp.concatenate([a[:, sm:], a[:, :sm]], axis=1)

    def kernel(x_ref, enc_ref, h_ref, c_ref,
               wh_ref, we_ref, battn_ref, v_ref, bv_ref,
               wconv_ref, bconv_ref, wci_ref, wcf_ref, wco_ref, mask_ref,
               skip_ref, hout_ref, cout_ref,
               cin_scr, patch_scr):
        f32 = jnp.float32
        x2 = x_ref[0]            # [Cin,  HW]
        h2 = h_ref[0]            # [Cout, HW]
        c2 = c_ref[0]            # [Cout, HW]
        enc2 = enc_ref[0]        # [Ce,   T*HW]

        # ---------------- additive attention over the time axis -----------------
        hfeat = jnp.dot(wh_ref[...], h2, preferred_element_type=f32)      # [A, HW]
        efeat = jnp.dot(we_ref[...], enc2, preferred_element_type=f32)    # [A, T*HW]
        hb = hfeat + battn_ref[...]                                       # [A, HW]
        # hoisted broadcasts (JAX does not CSE broadcast_in_dim inside the loops)
        v_b = jnp.broadcast_to(v_ref[...], (A, HW))                       # [A, HW]
        bv_b = jnp.broadcast_to(bv_ref[...], (1, HW))                     # [1, HW]

        scores = []
        for t in range(T):
            e_t = jnp.tanh(efeat[:, t * HW:(t + 1) * HW] + hb)            # [A, HW]
            # score = v . e  as a VPU multiply + small sublane (XLU) reduce
            scores.append(jnp.sum(v_b * e_t, axis=0, keepdims=True) + bv_b)

        m = scores[0]
        for t in range(1, T):
            m = jnp.maximum(m, scores[t])
        denom = jnp.zeros((1, HW), f32)
        context = jnp.zeros((Ce, HW), f32)
        for t in range(T):
            w_t = jnp.exp(scores[t] - m)                                  # [1, HW]
            denom = denom + w_t
            context = context + w_t * enc2[:, t * HW:(t + 1) * HW]        # [Ce, HW]
        context = context * pl.reciprocal(denom, approx=True)             # [Ce, HW]

        # ---------------- peephole ConvLSTM cell --------------------------------
        # conv input built by direct stores (no concatenate): [context | X | H_prev]
        cin_scr[0:Ce, :] = context
        cin_scr[Ce:Ce + Cin, :] = x2
        cin_scr[Ce + Cin:Ctot, :] = h2
        conv_bf = cin_scr[...].astype(jnp.bfloat16)                       # single cast

        # im2col: 9 lane-rotated, boundary-masked bf16 taps stored into one patch buffer
        for k in range(9):
            tap = shift_flat(conv_bf, tap_shifts[k]) * mask_ref[k:k + 1, :]
            patch_scr[k * Ctot:(k + 1) * Ctot, :] = tap

        # single K = 9*Ctot MXU matmul (bf16 operands, f32 accumulation)
        acc = jnp.dot(wconv_ref[...], patch_scr[...],
                      preferred_element_type=f32) + bconv_ref[...]        # [4*Cout, HW]

        i_c = acc[0 * Cout:1 * Cout, :]
        f_c = acc[1 * Cout:2 * Cout, :]
        g_c = acc[2 * Cout:3 * Cout, :]
        o_c = acc[3 * Cout:4 * Cout, :]

        def sigmoid(z):
            return 1.0 / (1.0 + jnp.exp(-z))

        i_g = sigmoid(i_c + wci_ref[...] * c2)
        f_g = sigmoid(f_c + wcf_ref[...] * c2)
        c_new = f_g * c2 + i_g * jnp.tanh(g_c)
        o_g = sigmoid(o_c + wco_ref[...] * c_new)
        h_new = o_g * jnp.tanh(c_new)

        # lane-dense stores straight into disjoint channel ranges (no concatenate)
        skip_ref[0, 0:Cout, :] = h_new
        skip_ref[0, Cout:Cout + Ce, :] = context
        skip_ref[0, Cout + Ce:Cres, :] = x2
        hout_ref[0] = h_new
        cout_ref[0] = c_new

    return kernel


def decoder_forward(x_nchw, enc_ncthw, h_nchw, c_nchw, params):
    """Pallas Decoder forward.  Inputs/outputs follow the PyTorch layout
    (X/H/C: NCHW, encoder_outputs: [B, 2*hidden, T, H, W])."""
    B, Cin, H, W = x_nchw.shape
    Ce, T = enc_ncthw.shape[1], enc_ncthw.shape[2]
    Cout = h_nchw.shape[1]
    A = params['wh'].shape[0]
    HW = H * W
    Ctot = Ce + Cin + Cout
    Cres = Cout + Ce + Cin

    # channels-first flattened layout: pure reshapes, no transposes anywhere
    x3 = x_nchw.reshape(B, Cin, HW)
    enc3 = enc_ncthw.reshape(B, Ce, T * HW)
    h3 = h_nchw.reshape(B, Cout, HW)
    c3 = c_nchw.reshape(B, Cout, HW)

    # per-tap boundary masks for the flattened 3x3 "same" conv (host-side constants)
    ys, xs = np.divmod(np.arange(HW), W)
    masks_np = np.zeros((9, HW), np.float32)
    for k in range(9):
        dy, dx = k // 3 - 1, k % 3 - 1
        masks_np[k] = ((ys + dy >= 0) & (ys + dy < H) &
                       (xs + dx >= 0) & (xs + dx < W))
    masks = jnp.asarray(masks_np, jnp.bfloat16)          # 0/1 values: exact in bf16

    # host-side one-time cast of the conv weight block (halves its DMA, removes per-step cast)
    wconv_bf = params['wconv'].astype(jnp.bfloat16)

    kernel = _make_decoder_kernel(H, W, T, Cin, Ce, Cout, A)

    def full(shape):
        n = len(shape)
        return pl.BlockSpec(shape, lambda b, _n=n: (0,) * _n)

    grid_spec = pltpu.PrefetchScalarGridSpec(
        num_scalar_prefetch=0,
        grid=(B,),
        in_specs=[
            pl.BlockSpec((1, Cin, HW), lambda b: (b, 0, 0)),          # X
            pl.BlockSpec((1, Ce, T * HW), lambda b: (b, 0, 0)),       # encoder outputs
            pl.BlockSpec((1, Cout, HW), lambda b: (b, 0, 0)),         # hidden
            pl.BlockSpec((1, Cout, HW), lambda b: (b, 0, 0)),         # cell
            full((A, Cout)),              # attention W_h  (1x1 conv on hidden)
            full((A, Ce)),                # attention W_e  (1x1 conv on enc outs)
            full((A, 1)),                 # attention bias
            full((A, 1)),                 # attention v
            full((1, 1)),                 # attention v bias
            full((4 * Cout, 9 * Ctot)),   # 3x3 conv weights (bf16), cols = (ky*3+kx)*Ctot + c
            full((4 * Cout, 1)),          # conv bias
            full((Cout, HW)),             # peephole W_ci (lane-dense)
            full((Cout, HW)),             # peephole W_cf
            full((Cout, HW)),             # peephole W_co
            full((9, HW)),                # conv boundary masks (bf16)
        ],
        out_specs=[
            pl.BlockSpec((1, Cres, HW), lambda b: (b, 0, 0)),
            pl.BlockSpec((1, Cout, HW), lambda b: (b, 0, 0)),
            pl.BlockSpec((1, Cout, HW), lambda b: (b, 0, 0)),
        ],
        scratch_shapes=[
            pltpu.VMEM((Ctot, HW), jnp.float32),        # conv input (context|X|H)
            pltpu.VMEM((9 * Ctot, HW), jnp.bfloat16),   # im2col patch buffer
        ],
    )

    skip, h_new, c_new = pl.pallas_call(
        kernel,
        out_shape=(
            jax.ShapeDtypeStruct((B, Cres, HW), jnp.float32),
            jax.ShapeDtypeStruct((B, Cout, HW), jnp.float32),
            jax.ShapeDtypeStruct((B, Cout, HW), jnp.float32),
        ),
        grid_spec=grid_spec,
        compiler_params=pltpu.CompilerParams(dimension_semantics=("parallel",)),
    )(x3, enc3, h3, c3,
      params['wh'], params['we'], params['battn'], params['v'], params['bv'],
      wconv_bf, params['bconv'], params['wci'], params['wcf'], params['wco'],
      masks)

    return (skip.reshape(B, Cres, H, W),
            h_new.reshape(B, Cout, H, W),
            c_new.reshape(B, Cout, H, W))


def ref_decoder(x, enc, h, c, params):
    """Plain-JAX reference with identical semantics (for validation).
    x/h/c: NCHW, enc: [B, Ce, T, H, W]."""
    B, Cin, H, W = x.shape
    Ce, T = enc.shape[1], enc.shape[2]
    Cout = h.shape[1]

    # additive attention over T
    hfeat = jnp.einsum('ac,bchw->bahw', params['wh'], h)
    efeat = jnp.einsum('ac,bcthw->bathw', params['we'], enc)
    e = jnp.tanh(efeat + hfeat[:, :, None, :, :]
                 + params['battn'][:, 0][None, :, None, None, None])
    scores = jnp.einsum('a,bathw->bthw', params['v'][:, 0], e) + params['bv'][0, 0]
    wts = jax.nn.softmax(scores, axis=1)
    context = jnp.einsum('bthw,bcthw->bchw', wts, enc)

    # peephole ConvLSTM cell
    conv_in = jnp.concatenate([context, x, h], axis=1)                  # [B, Ctot, H, W]
    wk = params['wconv'].reshape(4 * Cout, 3, 3, Ce + Cin + Cout)       # [O, KH, KW, I]
    y = lax.conv_general_dilated(conv_in, wk, (1, 1), 'SAME',
                                 dimension_numbers=('NCHW', 'OHWI', 'NCHW'))
    y = y + params['bconv'].reshape(1, 4 * Cout, 1, 1)
    i_c, f_c, g_c, o_c = jnp.split(y, 4, axis=1)
    wci = params['wci'].reshape(Cout, H, W)[None]
    wcf = params['wcf'].reshape(Cout, H, W)[None]
    wco = params['wco'].reshape(Cout, H, W)[None]
    sig = jax.nn.sigmoid
    i_g = sig(i_c + wci * c)
    f_g = sig(f_c + wcf * c)
    c_new = f_g * c + i_g * jnp.tanh(g_c)
    o_g = sig(o_c + wco * c_new)
    h_new = o_g * jnp.tanh(c_new)
    skip = jnp.concatenate([h_new, context, x], axis=1)
    return skip, h_new, c_new


if __name__ == "__main__":
    # Small shapes consistent with the module docstring
    # (in_channels == hidden_channels == out_channels so hidden-state feedback matches).
    B, Cin, hidden, Cout = 2, 4, 4, 4
    Ce = 2 * hidden
    H = W = 16
    T = 8
    A = 8                       # attention feature dim
    Ctot = Ce + Cin + Cout

    key = jax.random.PRNGKey(0)
    keys = jax.random.split(key, 14)
    f = jnp.float32

    x = jax.random.normal(keys[0], (B, Cin, H, W), f)
    enc = jax.random.normal(keys[1], (B, Ce, T, H, W), f)
    h0 = jax.random.normal(keys[2], (B, Cout, H, W), f)
    c0 = jax.random.normal(keys[3], (B, Cout, H, W), f)

    s = 0.2
    params = {
        'wh': s * jax.random.normal(keys[4], (A, Cout), f),
        'we': s * jax.random.normal(keys[5], (A, Ce), f),
        'battn': s * jax.random.normal(keys[6], (A, 1), f),
        'v': s * jax.random.normal(keys[7], (A, 1), f),
        'bv': s * jax.random.normal(keys[8], (1, 1), f),
        'wconv': s * jax.random.normal(keys[9], (4 * Cout, 9 * Ctot), f),
        'bconv': s * jax.random.normal(keys[10], (4 * Cout, 1), f),
        'wci': s * jax.random.normal(keys[11], (Cout, H * W), f),
        'wcf': s * jax.random.normal(keys[12], (Cout, H * W), f),
        'wco': s * jax.random.normal(keys[13], (Cout, H * W), f),
    }

    skip, h1, c1 = jax.block_until_ready(decoder_forward(x, enc, h0, c0, params))

    assert skip.shape == (B, Cout + Cin + Ce, H, W)
    assert h1.shape == (B, Cout, H, W)
    assert c1.shape == (B, Cout, H, W)

    rskip, rh, rc = ref_decoder(x, enc, h0, c0, params)
    # tolerance accounts for the bf16 conv matmul (f32 accumulation) + approx reciprocal
    assert jnp.allclose(skip, rskip, atol=3e-2, rtol=3e-2)
    assert jnp.allclose(h1, rh, atol=3e-2, rtol=3e-2)
    assert jnp.allclose(c1, rc, atol=3e-2, rtol=3e-2)

    print("KERNEL_OK")
</pallas_src>

<mosaic_0001>
module attributes {stable_mosaic.version = 11 : i64} {
  func.func @kernel(%arg0: i32, %arg1: memref<1x4x256xf32, #tpu.memory_space<vmem>>, %arg2: memref<1x8x2048xf32, #tpu.memory_space<vmem>>, %arg3: memref<1x4x256xf32, #tpu.memory_space<vmem>>, %arg4: memref<1x4x256xf32, #tpu.memory_space<vmem>>, %arg5: memref<8x4xf32, #tpu.memory_space<vmem>>, %arg6: memref<8x8xf32, #tpu.memory_space<vmem>>, %arg7: memref<8x1xf32, #tpu.memory_space<vmem>>, %arg8: memref<8x1xf32, #tpu.memory_space<vmem>>, %arg9: memref<1x1xf32, #tpu.memory_space<vmem>>, %arg10: memref<16x144xbf16, #tpu.memory_space<vmem>>, %arg11: memref<16x1xf32, #tpu.memory_space<vmem>>, %arg12: memref<4x256xf32, #tpu.memory_space<vmem>>, %arg13: memref<4x256xf32, #tpu.memory_space<vmem>>, %arg14: memref<4x256xf32, #tpu.memory_space<vmem>>, %arg15: memref<9x256xbf16, #tpu.memory_space<vmem>>, %arg16: memref<1x16x256xf32, #tpu.memory_space<vmem>>, %arg17: memref<1x4x256xf32, #tpu.memory_space<vmem>>, %arg18: memref<1x4x256xf32, #tpu.memory_space<vmem>>, %arg19: memref<16x256xf32, #tpu.memory_space<vmem>>, %arg20: memref<144x256xbf16, #tpu.memory_space<vmem>>) attributes {dimension_semantics = [#tpu.dimension_semantics<parallel>], iteration_bounds = array<i64: 2>, scalar_prefetch = 0 : i64, scratch_operands = 2 : i64, tpu.core_type = #tpu.core_type<tc>, window_params = [{transform_indices = @transform_0, window_bounds = array<i64: 1, 4, 256>}, {transform_indices = @transform_1, window_bounds = array<i64: 1, 8, 2048>}, {transform_indices = @transform_2, window_bounds = array<i64: 1, 4, 256>}, {transform_indices = @transform_3, window_bounds = array<i64: 1, 4, 256>}, {pipeline_mode = #tpu.pipeline_mode<synchronous>, transform_indices = @transform_4, window_bounds = array<i64: 8, 4>}, {pipeline_mode = #tpu.pipeline_mode<synchronous>, transform_indices = @transform_5, window_bounds = array<i64: 8, 8>}, {pipeline_mode = #tpu.pipeline_mode<synchronous>, transform_indices = @transform_6, window_bounds = array<i64: 8, 1>}, {pipeline_mode = #tpu.pipeline_mode<synchronous>, transform_indices = @transform_7, window_bounds = array<i64: 8, 1>}, {pipeline_mode = #tpu.pipeline_mode<synchronous>, transform_indices = @transform_8, window_bounds = array<i64: 1, 1>}, {pipeline_mode = #tpu.pipeline_mode<synchronous>, transform_indices = @transform_9, window_bounds = array<i64: 16, 144>}, {pipeline_mode = #tpu.pipeline_mode<synchronous>, transform_indices = @transform_10, window_bounds = array<i64: 16, 1>}, {pipeline_mode = #tpu.pipeline_mode<synchronous>, transform_indices = @transform_11, window_bounds = array<i64: 4, 256>}, {pipeline_mode = #tpu.pipeline_mode<synchronous>, transform_indices = @transform_12, window_bounds = array<i64: 4, 256>}, {pipeline_mode = #tpu.pipeline_mode<synchronous>, transform_indices = @transform_13, window_bounds = array<i64: 4, 256>}, {pipeline_mode = #tpu.pipeline_mode<synchronous>, transform_indices = @transform_14, window_bounds = array<i64: 9, 256>}, {transform_indices = @transform_15, window_bounds = array<i64: 1, 16, 256>}, {transform_indices = @transform_16, window_bounds = array<i64: 1, 4, 256>}, {transform_indices = @transform_17, window_bounds = array<i64: 1, 4, 256>}]} {
    %c0 = arith.constant 0 : index
    %c0_0 = arith.constant 0 : index
    %c0_1 = arith.constant 0 : index
    %0 = vector.load %arg1[%c0, %c0_0, %c0_1] : memref<1x4x256xf32, #tpu.memory_space<vmem>>, vector<1x4x256xf32>
    %1 = vector.shape_cast %0 : vector<1x4x256xf32> to vector<4x256xf32>
    %c0_2 = arith.constant 0 : index
    %c0_3 = arith.constant 0 : index
    %c0_4 = arith.constant 0 : index
    %2 = vector.load %arg3[%c0_2, %c0_3, %c0_4] : memref<1x4x256xf32, #tpu.memory_space<vmem>>, vector<1x4x256xf32>
    %3 = vector.shape_cast %2 : vector<1x4x256xf32> to vector<4x256xf32>
    %c0_5 = arith.constant 0 : index
    %c0_6 = arith.constant 0 : index
    %c0_7 = arith.constant 0 : index
    %4 = vector.load %arg4[%c0_5, %c0_6, %c0_7] : memref<1x4x256xf32, #tpu.memory_space<vmem>>, vector<1x4x256xf32>
    %5 = vector.shape_cast %4 : vector<1x4x256xf32> to vector<4x256xf32>
    %c0_8 = arith.constant 0 : index
    %c0_9 = arith.constant 0 : index
    %c0_10 = arith.constant 0 : index
    %6 = vector.load %arg2[%c0_8, %c0_9, %c0_10] : memref<1x8x2048xf32, #tpu.memory_space<vmem>>, vector<1x8x2048xf32>
    %7 = vector.shape_cast %6 : vector<1x8x2048xf32> to vector<8x2048xf32>
    %c0_11 = arith.constant 0 : index
    %c0_12 = arith.constant 0 : index
    %8 = vector.load %arg5[%c0_11, %c0_12] : memref<8x4xf32, #tpu.memory_space<vmem>>, vector<8x4xf32>
    %cst = arith.constant dense<0.000000e+00> : vector<8x256xf32>
    %9 = tpu.matmul %8, %3, %cst {dimension_numbers = #tpu.dot_dimension_numbers<[1], [0], [0], [1], [0, 0, 1, 1], [], []>} : vector<8x4xf32>, vector<4x256xf32>, vector<8x256xf32> -> vector<8x256xf32>
    %c0_13 = arith.constant 0 : index
    %c0_14 = arith.constant 0 : index
    %10 = vector.load %arg6[%c0_13, %c0_14] : memref<8x8xf32, #tpu.memory_space<vmem>>, vector<8x8xf32>
    %cst_15 = arith.constant dense<0.000000e+00> : vector<8x2048xf32>
    %11 = tpu.matmul %10, %7, %cst_15 {dimension_numbers = #tpu.dot_dimension_numbers<[1], [0], [0], [1], [0, 0, 1, 1], [], []>} : vector<8x8xf32>, vector<8x2048xf32>, vector<8x2048xf32> -> vector<8x2048xf32>
    %c0_16 = arith.constant 0 : index
    %c0_17 = arith.constant 0 : index
    %12 = vector.load %arg7[%c0_16, %c0_17] : memref<8x1xf32, #tpu.memory_space<vmem>>, vector<8x1xf32>
    %13 = vector.broadcast %12 : vector<8x1xf32> to vector<8x256xf32>
    %14 = arith.addf %9, %13 : vector<8x256xf32>
    %c0_18 = arith.constant 0 : index
    %c0_19 = arith.constant 0 : index
    %15 = vector.load %arg8[%c0_18, %c0_19] : memref<8x1xf32, #tpu.memory_space<vmem>>, vector<8x1xf32>
    %16 = vector.shape_cast %15 : vector<8x1xf32> to vector<8x1xf32>
    %17 = vector.broadcast %16 : vector<8x1xf32> to vector<8x256xf32>
    %c0_20 = arith.constant 0 : index
    %c0_21 = arith.constant 0 : index
    %18 = vector.load %arg9[%c0_20, %c0_21] : memref<1x1xf32, #tpu.memory_space<vmem>>, vector<1x1xf32>
    %19 = vector.shape_cast %18 : vector<1x1xf32> to vector<1x1xf32>
    %20 = vector.broadcast %19 : vector<1x1xf32> to vector<1x256xf32>
    %21 = vector.extract_strided_slice %11 {offsets = [0, 0], sizes = [8, 256], strides = [1, 1]} : vector<8x2048xf32> to vector<8x256xf32>
    %22 = arith.addf %21, %14 : vector<8x256xf32>
    %23 = math.tanh %22 : vector<8x256xf32>
    %24 = arith.mulf %17, %23 : vector<8x256xf32>
    %cst_22 = arith.constant dense<0.000000e+00> : vector<256xf32>
    %25 = vector.multi_reduction <add>, %24, %cst_22 [0] : vector<8x256xf32> to vector<256xf32>
    %26 = vector.shape_cast %25 : vector<256xf32> to vector<1x256xf32>
    %27 = arith.addf %26, %20 : vector<1x256xf32>
    %28 = vector.extract_strided_slice %11 {offsets = [0, 256], sizes = [8, 256], strides = [1, 1]} : vector<8x2048xf32> to vector<8x256xf32>
    %29 = arith.addf %28, %14 : vector<8x256xf32>
    %30 = math.tanh %29 : vector<8x256xf32>
    %31 = arith.mulf %17, %30 : vector<8x256xf32>
    %cst_23 = arith.constant dense<0.000000e+00> : vector<256xf32>
    %32 = vector.multi_reduction <add>, %31, %cst_23 [0] : vector<8x256xf32> to vector<256xf32>
    %33 = vector.shape_cast %32 : vector<256xf32> to vector<1x256xf32>
    %34 = arith.addf %33, %20 : vector<1x256xf32>
    %35 = vector.extract_strided_slice %11 {offsets = [0, 512], sizes = [8, 256], strides = [1, 1]} : vector<8x2048xf32> to vector<8x256xf32>
    %36 = arith.addf %35, %14 : vector<8x256xf32>
    %37 = math.tanh %36 : vector<8x256xf32>
    %38 = arith.mulf %17, %37 : vector<8x256xf32>
    %cst_24 = arith.constant dense<0.000000e+00> : vector<256xf32>
    %39 = vector.multi_reduction <add>, %38, %cst_24 [0] : vector<8x256xf32> to vector<256xf32>
    %40 = vector.shape_cast %39 : vector<256xf32> to vector<1x256xf32>
    %41 = arith.addf %40, %20 : vector<1x256xf32>
    %42 = vector.extract_strided_slice %11 {offsets = [0, 768], sizes = [8, 256], strides = [1, 1]} : vector<8x2048xf32> to vector<8x256xf32>
    %43 = arith.addf %42, %14 : vector<8x256xf32>
    %44 = math.tanh %43 : vector<8x256xf32>
    %45 = arith.mulf %17, %44 : vector<8x256xf32>
    %cst_25 = arith.constant dense<0.000000e+00> : vector<256xf32>
    %46 = vector.multi_reduction <add>, %45, %cst_25 [0] : vector<8x256xf32> to vector<256xf32>
    %47 = vector.shape_cast %46 : vector<256xf32> to vector<1x256xf32>
    %48 = arith.addf %47, %20 : vector<1x256xf32>
    %49 = vector.extract_strided_slice %11 {offsets = [0, 1024], sizes = [8, 256], strides = [1, 1]} : vector<8x2048xf32> to vector<8x256xf32>
    %50 = arith.addf %49, %14 : vector<8x256xf32>
    %51 = math.tanh %50 : vector<8x256xf32>
    %52 = arith.mulf %17, %51 : vector<8x256xf32>
    %cst_26 = arith.constant dense<0.000000e+00> : vector<256xf32>
    %53 = vector.multi_reduction <add>, %52, %cst_26 [0] : vector<8x256xf32> to vector<256xf32>
    %54 = vector.shape_cast %53 : vector<256xf32> to vector<1x256xf32>
    %55 = arith.addf %54, %20 : vector<1x256xf32>
    %56 = vector.extract_strided_slice %11 {offsets = [0, 1280], sizes = [8, 256], strides = [1, 1]} : vector<8x2048xf32> to vector<8x256xf32>
    %57 = arith.addf %56, %14 : vector<8x256xf32>
    %58 = math.tanh %57 : vector<8x256xf32>
    %59 = arith.mulf %17, %58 : vector<8x256xf32>
    %cst_27 = arith.constant dense<0.000000e+00> : vector<256xf32>
    %60 = vector.multi_reduction <add>, %59, %cst_27 [0] : vector<8x256xf32> to vector<256xf32>
    %61 = vector.shape_cast %60 : vector<256xf32> to vector<1x256xf32>
    %62 = arith.addf %61, %20 : vector<1x256xf32>
    %63 = vector.extract_strided_slice %11 {offsets = [0, 1536], sizes = [8, 256], strides = [1, 1]} : vector<8x2048xf32> to vector<8x256xf32>
    %64 = arith.addf %63, %14 : vector<8x256xf32>
    %65 = math.tanh %64 : vector<8x256xf32>
    %66 = arith.mulf %17, %65 : vector<8x256xf32>
    %cst_28 = arith.constant dense<0.000000e+00> : vector<256xf32>
    %67 = vector.multi_reduction <add>, %66, %cst_28 [0] : vector<8x256xf32> to vector<256xf32>
    %68 = vector.shape_cast %67 : vector<256xf32> to vector<1x256xf32>
    %69 = arith.addf %68, %20 : vector<1x256xf32>
    %70 = vector.extract_strided_slice %11 {offsets = [0, 1792], sizes = [8, 256], strides = [1, 1]} : vector<8x2048xf32> to vector<8x256xf32>
    %71 = arith.addf %70, %14 : vector<8x256xf32>
    %72 = math.tanh %71 : vector<8x256xf32>
    %73 = arith.mulf %17, %72 : vector<8x256xf32>
    %cst_29 = arith.constant dense<0.000000e+00> : vector<256xf32>
    %74 = vector.multi_reduction <add>, %73, %cst_29 [0] : vector<8x256xf32> to vector<256xf32>
    %75 = vector.shape_cast %74 : vector<256xf32> to vector<1x256xf32>
    %76 = arith.addf %75, %20 : vector<1x256xf32>
    %77 = arith.maximumf %27, %34 : vector<1x256xf32>
    %78 = arith.maximumf %77, %41 : vector<1x256xf32>
    %79 = arith.maximumf %78, %48 : vector<1x256xf32>
    %80 = arith.maximumf %79, %55 : vector<1x256xf32>
    %81 = arith.maximumf %80, %62 : vector<1x256xf32>
    %82 = arith.maximumf %81, %69 : vector<1x256xf32>
    %83 = arith.maximumf %82, %76 : vector<1x256xf32>
    %cst_30 = arith.constant 0.000000e+00 : f32
    %84 = vector.broadcast %cst_30 : f32 to vector<1x256xf32>
    %cst_31 = arith.constant 0.000000e+00 : f32
    %85 = vector.broadcast %cst_31 : f32 to vector<8x256xf32>
    %86 = arith.subf %27, %83 : vector<1x256xf32>
    %87 = math.exp %86 : vector<1x256xf32>
    %88 = arith.addf %84, %87 : vector<1x256xf32>
    %89 = vector.extract_strided_slice %7 {offsets = [0, 0], sizes = [8, 256], strides = [1, 1]} : vector<8x2048xf32> to vector<8x256xf32>
    %90 = vector.broadcast %87 : vector<1x256xf32> to vector<8x256xf32>
    %91 = arith.mulf %90, %89 : vector<8x256xf32>
    %92 = arith.addf %85, %91 : vector<8x256xf32>
    %93 = arith.subf %34, %83 : vector<1x256xf32>
    %94 = math.exp %93 : vector<1x256xf32>
    %95 = arith.addf %88, %94 : vector<1x256xf32>
    %96 = vector.extract_strided_slice %7 {offsets = [0, 256], sizes = [8, 256], strides = [1, 1]} : vector<8x2048xf32> to vector<8x256xf32>
    %97 = vector.broadcast %94 : vector<1x256xf32> to vector<8x256xf32>
    %98 = arith.mulf %97, %96 : vector<8x256xf32>
    %99 = arith.addf %92, %98 : vector<8x256xf32>
    %100 = arith.subf %41, %83 : vector<1x256xf32>
    %101 = math.exp %100 : vector<1x256xf32>
    %102 = arith.addf %95, %101 : vector<1x256xf32>
    %103 = vector.extract_strided_slice %7 {offsets = [0, 512], sizes = [8, 256], strides = [1, 1]} : vector<8x2048xf32> to vector<8x256xf32>
    %104 = vector.broadcast %101 : vector<1x256xf32> to vector<8x256xf32>
    %105 = arith.mulf %104, %103 : vector<8x256xf32>
    %106 = arith.addf %99, %105 : vector<8x256xf32>
    %107 = arith.subf %48, %83 : vector<1x256xf32>
    %108 = math.exp %107 : vector<1x256xf32>
    %109 = arith.addf %102, %108 : vector<1x256xf32>
    %110 = vector.extract_strided_slice %7 {offsets = [0, 768], sizes = [8, 256], strides = [1, 1]} : vector<8x2048xf32> to vector<8x256xf32>
    %111 = vector.broadcast %108 : vector<1x256xf32> to vector<8x256xf32>
    %112 = arith.mulf %111, %110 : vector<8x256xf32>
    %113 = arith.addf %106, %112 : vector<8x256xf32>
    %114 = arith.subf %55, %83 : vector<1x256xf32>
    %115 = math.exp %114 : vector<1x256xf32>
    %116 = arith.addf %109, %115 : vector<1x256xf32>
    %117 = vector.extract_strided_slice %7 {offsets = [0, 1024], sizes = [8, 256], strides = [1, 1]} : vector<8x2048xf32> to vector<8x256xf32>
    %118 = vector.broadcast %115 : vector<1x256xf32> to vector<8x256xf32>
    %119 = arith.mulf %118, %117 : vector<8x256xf32>
    %120 = arith.addf %113, %119 : vector<8x256xf32>
    %121 = arith.subf %62, %83 : vector<1x256xf32>
    %122 = math.exp %121 : vector<1x256xf32>
    %123 = arith.addf %116, %122 : vector<1x256xf32>
    %124 = vector.extract_strided_slice %7 {offsets = [0, 1280], sizes = [8, 256], strides = [1, 1]} : vector<8x2048xf32> to vector<8x256xf32>
    %125 = vector.broadcast %122 : vector<1x256xf32> to vector<8x256xf32>
    %126 = arith.mulf %125, %124 : vector<8x256xf32>
    %127 = arith.addf %120, %126 : vector<8x256xf32>
    %128 = arith.subf %69, %83 : vector<1x256xf32>
    %129 = math.exp %128 : vector<1x256xf32>
    %130 = arith.addf %123, %129 : vector<1x256xf32>
    %131 = vector.extract_strided_slice %7 {offsets = [0, 1536], sizes = [8, 256], strides = [1, 1]} : vector<8x2048xf32> to vector<8x256xf32>
    %132 = vector.broadcast %129 : vector<1x256xf32> to vector<8x256xf32>
    %133 = arith.mulf %132, %131 : vector<8x256xf32>
    %134 = arith.addf %127, %133 : vector<8x256xf32>
    %135 = arith.subf %76, %83 : vector<1x256xf32>
    %136 = math.exp %135 : vector<1x256xf32>
    %137 = arith.addf %130, %136 : vector<1x256xf32>
    %138 = vector.extract_strided_slice %7 {offsets = [0, 1792], sizes = [8, 256], strides = [1, 1]} : vector<8x2048xf32> to vector<8x256xf32>
    %139 = vector.broadcast %136 : vector<1x256xf32> to vector<8x256xf32>
    %140 = arith.mulf %139, %138 : vector<8x256xf32>
    %141 = arith.addf %134, %140 : vector<8x256xf32>
    %142 = tpu.reciprocal %137 {approx = true} : vector<1x256xf32> -> vector<1x256xf32>
    %143 = vector.broadcast %142 : vector<1x256xf32> to vector<8x256xf32>
    %144 = arith.mulf %141, %143 : vector<8x256xf32>
    %c0_32 = arith.constant 0 : index
    %c0_33 = arith.constant 0 : index
    %145 = vector.load %arg19[%c0_32, %c0_33] : memref<16x256xf32, #tpu.memory_space<vmem>>, vector<8x256xf32>
    tpu.vector_store %arg19[%c0_32, %c0_33], %144 {strides = array<i32>} : memref<16x256xf32, #tpu.memory_space<vmem>>, vector<8x256xf32>,
    %c8 = arith.constant 8 : index
    %c0_34 = arith.constant 0 : index
    %146 = vector.load %arg19[%c8, %c0_34] : memref<16x256xf32, #tpu.memory_space<vmem>>, vector<4x256xf32>
    tpu.vector_store %arg19[%c8, %c0_34], %1 {strides = array<i32>} : memref<16x256xf32, #tpu.memory_space<vmem>>, vector<4x256xf32>,
    %c12 = arith.constant 12 : index
    %c0_35 = arith.constant 0 : index
    %147 = vector.load %arg19[%c12, %c0_35] : memref<16x256xf32, #tpu.memory_space<vmem>>, vector<4x256xf32>
    tpu.vector_store %arg19[%c12, %c0_35], %3 {strides = array<i32>} : memref<16x256xf32, #tpu.memory_space<vmem>>, vector<4x256xf32>,
    %c0_36 = arith.constant 0 : index
    %c0_37 = arith.constant 0 : index
    %148 = vector.load %arg19[%c0_36, %c0_37] : memref<16x256xf32, #tpu.memory_space<vmem>>, vector<16x256xf32>
    %149 = arith.truncf %148 : vector<16x256xf32> to vector<16x256xbf16>
    %150 = vector.extract_strided_slice %149 {offsets = [0, 239], sizes = [16, 17], strides = [1, 1]} : vector<16x256xbf16> to vector<16x17xbf16>
    %151 = vector.extract_strided_slice %149 {offsets = [0, 0], sizes = [16, 239], strides = [1, 1]} : vector<16x256xbf16> to vector<16x239xbf16>
    %152 = tpu.concatenate %150, %151 in 1 : vector<16x17xbf16>, vector<16x239xbf16> -> vector<16x256xbf16>
    %c0_38 = arith.constant 0 : index
    %c0_39 = arith.constant 0 : index
    %153 = vector.load %arg15[%c0_38, %c0_39] : memref<9x256xbf16, #tpu.memory_space<vmem>>, vector<1x256xbf16>
    %154 = vector.broadcast %153 : vector<1x256xbf16> to vector<16x256xbf16>
    %155 = arith.mulf %152, %154 : vector<16x256xbf16>
    %c0_40 = arith.constant 0 : index
    %c0_41 = arith.constant 0 : index
    %156 = vector.load %arg20[%c0_40, %c0_41] : memref<144x256xbf16, #tpu.memory_space<vmem>>, vector<16x256xbf16>
    tpu.vector_store %arg20[%c0_40, %c0_41], %155 {strides = array<i32>} : memref<144x256xbf16, #tpu.memory_space<vmem>>, vector<16x256xbf16>,
    %157 = vector.extract_strided_slice %149 {offsets = [0, 240], sizes = [16, 16], strides = [1, 1]} : vector<16x256xbf16> to vector<16x16xbf16>
    %158 = vector.extract_strided_slice %149 {offsets = [0, 0], sizes = [16, 240], strides = [1, 1]} : vector<16x256xbf16> to vector<16x240xbf16>
    %159 = tpu.concatenate %157, %158 in 1 : vector<16x16xbf16>, vector<16x240xbf16> -> vector<16x256xbf16>
    %c1 = arith.constant 1 : index
    %c0_42 = arith.constant 0 : index
    %160 = vector.load %arg15[%c1, %c0_42] : memref<9x256xbf16, #tpu.memory_space<vmem>>, vector<1x256xbf16>
    %161 = vector.broadcast %160 : vector<1x256xbf16> to vector<16x256xbf16>
    %162 = arith.mulf %159, %161 : vector<16x256xbf16>
    %c16 = arith.constant 16 : index
    %c0_43 = arith.constant 0 : index
    %163 = vector.load %arg20[%c16, %c0_43] : memref<144x256xbf16, #tpu.memory_space<vmem>>, vector<16x256xbf16>
    tpu.vector_store %arg20[%c16, %c0_43], %162 {strides = array<i32>} : memref<144x256xbf16, #tpu.memory_space<vmem>>, vector<16x256xbf16>,
    %164 = vector.extract_strided_slice %149 {offsets = [0, 241], sizes = [16, 15], strides = [1, 1]} : vector<16x256xbf16> to vector<16x15xbf16>
    %165 = vector.extract_strided_slice %149 {offsets = [0, 0], sizes = [16, 241], strides = [1, 1]} : vector<16x256xbf16> to vector<16x241xbf16>
    %166 = tpu.concatenate %164, %165 in 1 : vector<16x15xbf16>, vector<16x241xbf16> -> vector<16x256xbf16>
    %c2 = arith.constant 2 : index
    %c0_44 = arith.constant 0 : index
    %167 = vector.load %arg15[%c2, %c0_44] : memref<9x256xbf16, #tpu.memory_space<vmem>>, vector<1x256xbf16>
    %168 = vector.broadcast %167 : vector<1x256xbf16> to vector<16x256xbf16>
    %169 = arith.mulf %166, %168 : vector<16x256xbf16>
    %c32 = arith.constant 32 : index
    %c0_45 = arith.constant 0 : index
    %170 = vector.load %arg20[%c32, %c0_45] : memref<144x256xbf16, #tpu.memory_space<vmem>>, vector<16x256xbf16>
    tpu.vector_store %arg20[%c32, %c0_45], %169 {strides = array<i32>} : memref<144x256xbf16, #tpu.memory_space<vmem>>, vector<16x256xbf16>,
    %171 = vector.extract_strided_slice %149 {offsets = [0, 255], sizes = [16, 1], strides = [1, 1]} : vector<16x256xbf16> to vector<16x1xbf16>
    %172 = vector.extract_strided_slice %149 {offsets = [0, 0], sizes = [16, 255], strides = [1, 1]} : vector<16x256xbf16> to vector<16x255xbf16>
    %173 = tpu.concatenate %171, %172 in 1 : vector<16x1xbf16>, vector<16x255xbf16> -> vector<16x256xbf16>
    %c3 = arith.constant 3 : index
    %c0_46 = arith.constant 0 : index
    %174 = vector.load %arg15[%c3, %c0_46] : memref<9x256xbf16, #tpu.memory_space<vmem>>, vector<1x256xbf16>
    %175 = vector.broadcast %174 : vector<1x256xbf16> to vector<16x256xbf16>
    %176 = arith.mulf %173, %175 : vector<16x256xbf16>
    %c48 = arith.constant 48 : index
    %c0_47 = arith.constant 0 : index
    %177 = vector.load %arg20[%c48, %c0_47] : memref<144x256xbf16, #tpu.memory_space<vmem>>, vector<16x256xbf16>
    tpu.vector_store %arg20[%c48, %c0_47], %176 {strides = array<i32>} : memref<144x256xbf16, #tpu.memory_space<vmem>>, vector<16x256xbf16>,
    %c4 = arith.constant 4 : index
    %c0_48 = arith.constant 0 : index
    %178 = vector.load %arg15[%c4, %c0_48] : memref<9x256xbf16, #tpu.memory_space<vmem>>, vector<1x256xbf16>
    %179 = vector.broadcast %178 : vector<1x256xbf16> to vector<16x256xbf16>
    %180 = arith.mulf %149, %179 : vector<16x256xbf16>
    %c64 = arith.constant 64 : index
    %c0_49 = arith.constant 0 : index
    %181 = vector.load %arg20[%c64, %c0_49] : memref<144x256xbf16, #tpu.memory_space<vmem>>, vector<16x256xbf16>
    tpu.vector_store %arg20[%c64, %c0_49], %180 {strides = array<i32>} : memref<144x256xbf16, #tpu.memory_space<vmem>>, vector<16x256xbf16>,
    %182 = vector.extract_strided_slice %149 {offsets = [0, 1], sizes = [16, 255], strides = [1, 1]} : vector<16x256xbf16> to vector<16x255xbf16>
    %183 = vector.extract_strided_slice %149 {offsets = [0, 0], sizes = [16, 1], strides = [1, 1]} : vector<16x256xbf16> to vector<16x1xbf16>
    %184 = tpu.concatenate %182, %183 in 1 : vector<16x255xbf16>, vector<16x1xbf16> -> vector<16x256xbf16>
    %c5 = arith.constant 5 : index
    %c0_50 = arith.constant 0 : index
    %185 = vector.load %arg15[%c5, %c0_50] : memref<9x256xbf16, #tpu.memory_space<vmem>>, vector<1x256xbf16>
    %186 = vector.broadcast %185 : vector<1x256xbf16> to vector<16x256xbf16>
    %187 = arith.mulf %184, %186 : vector<16x256xbf16>
    %c80 = arith.constant 80 : index
    %c0_51 = arith.constant 0 : index
    %188 = vector.load %arg20[%c80, %c0_51] : memref<144x256xbf16, #tpu.memory_space<vmem>>, vector<16x256xbf16>
    tpu.vector_store %arg20[%c80, %c0_51], %187 {strides = array<i32>} : memref<144x256xbf16, #tpu.memory_space<vmem>>, vector<16x256xbf16>,
    %189 = vector.extract_strided_slice %149 {offsets = [0, 15], sizes = [16, 241], strides = [1, 1]} : vector<16x256xbf16> to vector<16x241xbf16>
    %190 = vector.extract_strided_slice %149 {offsets = [0, 0], sizes = [16, 15], strides = [1, 1]} : vector<16x256xbf16> to vector<16x15xbf16>
    %191 = tpu.concatenate %189, %190 in 1 : vector<16x241xbf16>, vector<16x15xbf16> -> vector<16x256xbf16>
    %c6 = arith.constant 6 : index
    %c0_52 = arith.constant 0 : index
    %192 = vector.load %arg15[%c6, %c0_52] : memref<9x256xbf16, #tpu.memory_space<vmem>>, vector<1x256xbf16>
    %193 = vector.broadcast %192 : vector<1x256xbf16> to vector<16x256xbf16>
    %194 = arith.mulf %191, %193 : vector<16x256xbf16>
    %c96 = arith.constant 96 : index
    %c0_53 = arith.constant 0 : index
    %195 = vector.load %arg20[%c96, %c0_53] : memref<144x256xbf16, #tpu.memory_space<vmem>>, vector<16x256xbf16>
    tpu.vector_store %arg20[%c96, %c0_53], %194 {strides = array<i32>} : memref<144x256xbf16, #tpu.memory_space<vmem>>, vector<16x256xbf16>,
    %196 = vector.extract_strided_slice %149 {offsets = [0, 16], sizes = [16, 240], strides = [1, 1]} : vector<16x256xbf16> to vector<16x240xbf16>
    %197 = vector.extract_strided_slice %149 {offsets = [0, 0], sizes = [16, 16], strides = [1, 1]} : vector<16x256xbf16> to vector<16x16xbf16>
    %198 = tpu.concatenate %196, %197 in 1 : vector<16x240xbf16>, vector<16x16xbf16> -> vector<16x256xbf16>
    %c7 = arith.constant 7 : index
    %c0_54 = arith.constant 0 : index
    %199 = vector.load %arg15[%c7, %c0_54] : memref<9x256xbf16, #tpu.memory_space<vmem>>, vector<1x256xbf16>
    %200 = vector.broadcast %199 : vector<1x256xbf16> to vector<16x256xbf16>
    %201 = arith.mulf %198, %200 : vector<16x256xbf16>
    %c112 = arith.constant 112 : index
    %c0_55 = arith.constant 0 : index
    %202 = vector.load %arg20[%c112, %c0_55] : memref<144x256xbf16, #tpu.memory_space<vmem>>, vector<16x256xbf16>
    tpu.vector_store %arg20[%c112, %c0_55], %201 {strides = array<i32>} : memref<144x256xbf16, #tpu.memory_space<vmem>>, vector<16x256xbf16>,
    %203 = vector.extract_strided_slice %149 {offsets = [0, 17], sizes = [16, 239], strides = [1, 1]} : vector<16x256xbf16> to vector<16x239xbf16>
    %204 = vector.extract_strided_slice %149 {offsets = [0, 0], sizes = [16, 17], strides = [1, 1]} : vector<16x256xbf16> to vector<16x17xbf16>
    %205 = tpu.concatenate %203, %204 in 1 : vector<16x239xbf16>, vector<16x17xbf16> -> vector<16x256xbf16>
    %c8_56 = arith.constant 8 : index
    %c0_57 = arith.constant 0 : index
    %206 = vector.load %arg15[%c8_56, %c0_57] : memref<9x256xbf16, #tpu.memory_space<vmem>>, vector<1x256xbf16>
    %207 = vector.broadcast %206 : vector<1x256xbf16> to vector<16x256xbf16>
    %208 = arith.mulf %205, %207 : vector<16x256xbf16>
    %c128 = arith.constant 128 : index
    %c0_58 = arith.constant 0 : index
    %209 = vector.load %arg20[%c128, %c0_58] : memref<144x256xbf16, #tpu.memory_space<vmem>>, vector<16x256xbf16>
    tpu.vector_store %arg20[%c128, %c0_58], %208 {strides = array<i32>} : memref<144x256xbf16, #tpu.memory_space<vmem>>, vector<16x256xbf16>,
    %c0_59 = arith.constant 0 : index
    %c0_60 = arith.constant 0 : index
    %210 = vector.load %arg10[%c0_59, %c0_60] : memref<16x144xbf16, #tpu.memory_space<vmem>>, vector<16x144xbf16>
    %c0_61 = arith.constant 0 : index
    %c0_62 = arith.constant 0 : index
    %211 = vector.load %arg20[%c0_61, %c0_62] : memref<144x256xbf16, #tpu.memory_space<vmem>>, vector<144x256xbf16>
    %cst_63 = arith.constant dense<0.000000e+00> : vector<16x256xf32>
    %212 = tpu.matmul %210, %211, %cst_63 {dimension_numbers = #tpu.dot_dimension_numbers<[1], [0], [0], [1], [0, 0, 1, 1], [], []>} : vector<16x144xbf16>, vector<144x256xbf16>, vector<16x256xf32> -> vector<16x256xf32>
    %c0_64 = arith.constant 0 : index
    %c0_65 = arith.constant 0 : index
    %213 = vector.load %arg11[%c0_64, %c0_65] : memref<16x1xf32, #tpu.memory_space<vmem>>, vector<16x1xf32>
    %214 = vector.broadcast %213 : vector<16x1xf32> to vector<16x256xf32>
    %215 = arith.addf %212, %214 : vector<16x256xf32>
    %216 = vector.extract_strided_slice %215 {offsets = [0, 0], sizes = [4, 256], strides = [1, 1]} : vector<16x256xf32> to vector<4x256xf32>
    %217 = vector.extract_strided_slice %215 {offsets = [4, 0], sizes = [4, 256], strides = [1, 1]} : vector<16x256xf32> to vector<4x256xf32>
    %218 = vector.extract_strided_slice %215 {offsets = [8, 0], sizes = [4, 256], strides = [1, 1]} : vector<16x256xf32> to vector<4x256xf32>
    %219 = vector.extract_strided_slice %215 {offsets = [12, 0], sizes = [4, 256], strides = [1, 1]} : vector<16x256xf32> to vector<4x256xf32>
    %c0_66 = arith.constant 0 : index
    %c0_67 = arith.constant 0 : index
    %220 = vector.load %arg12[%c0_66, %c0_67] : memref<4x256xf32, #tpu.memory_space<vmem>>, vector<4x256xf32>
    %221 = arith.mulf %220, %5 : vector<4x256xf32>
    %222 = arith.addf %216, %221 : vector<4x256xf32>
    %cst_68 = arith.constant 0.000000e+00 : f32
    %223 = vector.broadcast %cst_68 : f32 to vector<4x256xf32>
    %224 = arith.subf %223, %222 : vector<4x256xf32>
    %225 = math.exp %224 : vector<4x256xf32>
    %cst_69 = arith.constant 1.000000e+00 : f32
    %226 = vector.broadcast %cst_69 : f32 to vector<4x256xf32>
    %227 = arith.addf %226, %225 : vector<4x256xf32>
    %cst_70 = arith.constant 1.000000e+00 : f32
    %228 = vector.broadcast %cst_70 : f32 to vector<4x256xf32>
    %229 = arith.divf %228, %227 : vector<4x256xf32>
    %c0_71 = arith.constant 0 : index
    %c0_72 = arith.constant 0 : index
    %230 = vector.load %arg13[%c0_71, %c0_72] : memref<4x256xf32, #tpu.memory_space<vmem>>, vector<4x256xf32>
    %231 = arith.mulf %230, %5 : vector<4x256xf32>
    %232 = arith.addf %217, %231 : vector<4x256xf32>
    %cst_73 = arith.constant 0.000000e+00 : f32
    %233 = vector.broadcast %cst_73 : f32 to vector<4x256xf32>
    %234 = arith.subf %233, %232 : vector<4x256xf32>
    %235 = math.exp %234 : vector<4x256xf32>
    %cst_74 = arith.constant 1.000000e+00 : f32
    %236 = vector.broadcast %cst_74 : f32 to vector<4x256xf32>
    %237 = arith.addf %236, %235 : vector<4x256xf32>
    %cst_75 = arith.constant 1.000000e+00 : f32
    %238 = vector.broadcast %cst_75 : f32 to vector<4x256xf32>
    %239 = arith.divf %238, %237 : vector<4x256xf32>
    %240 = arith.mulf %239, %5 : vector<4x256xf32>
    %241 = math.tanh %218 : vector<4x256xf32>
    %242 = arith.mulf %229, %241 : vector<4x256xf32>
    %243 = arith.addf %240, %242 : vector<4x256xf32>
    %c0_76 = arith.constant 0 : index
    %c0_77 = arith.constant 0 : index
    %244 = vector.load %arg14[%c0_76, %c0_77] : memref<4x256xf32, #tpu.memory_space<vmem>>, vector<4x256xf32>
    %245 = arith.mulf %244, %243 : vector<4x256xf32>
    %246 = arith.addf %219, %245 : vector<4x256xf32>
    %cst_78 = arith.constant 0.000000e+00 : f32
    %247 = vector.broadcast %cst_78 : f32 to vector<4x256xf32>
    %248 = arith.subf %247, %246 : vector<4x256xf32>
    %249 = math.exp %248 : vector<4x256xf32>
    %cst_79 = arith.constant 1.000000e+00 : f32
    %250 = vector.broadcast %cst_79 : f32 to vector<4x256xf32>
    %251 = arith.addf %250, %249 : vector<4x256xf32>
    %cst_80 = arith.constant 1.000000e+00 : f32
    %252 = vector.broadcast %cst_80 : f32 to vector<4x256xf32>
    %253 = arith.divf %252, %251 : vector<4x256xf32>
    %254 = math.tanh %243 : vector<4x256xf32>
    %255 = arith.mulf %253, %254 : vector<4x256xf32>
    %c0_81 = arith.constant 0 : index
    %c0_82 = arith.constant 0 : index
    %c0_83 = arith.constant 0 : index
    %256 = vector.load %arg16[%c0_81, %c0_82, %c0_83] : memref<1x16x256xf32, #tpu.memory_space<vmem>>, vector<1x4x256xf32>
    %257 = vector.shape_cast %256 : vector<1x4x256xf32> to vector<4x256xf32>
    %258 = vector.shape_cast %255 : vector<4x256xf32> to vector<1x4x256xf32>
    tpu.vector_store %arg16[%c0_81, %c0_82, %c0_83], %258 {strides = array<i32>} : memref<1x16x256xf32, #tpu.memory_space<vmem>>, vector<1x4x256xf32>,
    %c0_84 = arith.constant 0 : index
    %c4_85 = arith.constant 4 : index
    %c0_86 = arith.constant 0 : index
    %259 = vector.load %arg16[%c0_84, %c4_85, %c0_86] : memref<1x16x256xf32, #tpu.memory_space<vmem>>, vector<1x8x256xf32>
    %260 = vector.shape_cast %259 : vector<1x8x256xf32> to vector<8x256xf32>
    %261 = vector.shape_cast %144 : vector<8x256xf32> to vector<1x8x256xf32>
    tpu.vector_store %arg16[%c0_84, %c4_85, %c0_86], %261 {strides = array<i32>} : memref<1x16x256xf32, #tpu.memory_space<vmem>>, vector<1x8x256xf32>,
    %c0_87 = arith.constant 0 : index
    %c12_88 = arith.constant 12 : index
    %c0_89 = arith.constant 0 : index
    %262 = vector.load %arg16[%c0_87, %c12_88, %c0_89] : memref<1x16x256xf32, #tpu.memory_space<vmem>>, vector<1x4x256xf32>
    %263 = vector.shape_cast %262 : vector<1x4x256xf32> to vector<4x256xf32>
    %264 = vector.shape_cast %1 : vector<4x256xf32> to vector<1x4x256xf32>
    tpu.vector_store %arg16[%c0_87, %c12_88, %c0_89], %264 {strides = array<i32>} : memref<1x16x256xf32, #tpu.memory_space<vmem>>, vector<1x4x256xf32>,
    %c0_90 = arith.constant 0 : index
    %c0_91 = arith.constant 0 : index
    %c0_92 = arith.constant 0 : index
    %265 = vector.load %arg17[%c0_90, %c0_91, %c0_92] : memref<1x4x256xf32, #tpu.memory_space<vmem>>, vector<1x4x256xf32>
    %266 = vector.shape_cast %265 : vector<1x4x256xf32> to vector<4x256xf32>
    %267 = vector.shape_cast %255 : vector<4x256xf32> to vector<1x4x256xf32>
    tpu.vector_store %arg17[%c0_90, %c0_91, %c0_92], %267 {strides = array<i32>} : memref<1x4x256xf32, #tpu.memory_space<vmem>>, vector<1x4x256xf32>,
    %c0_93 = arith.constant 0 : index
    %c0_94 = arith.constant 0 : index
    %c0_95 = arith.constant 0 : index
    %268 = vector.load %arg18[%c0_93, %c0_94, %c0_95] : memref<1x4x256xf32, #tpu.memory_space<vmem>>, vector<1x4x256xf32>
    %269 = vector.shape_cast %268 : vector<1x4x256xf32> to vector<4x256xf32>
    %270 = vector.shape_cast %243 : vector<4x256xf32> to vector<1x4x256xf32>
    tpu.vector_store %arg18[%c0_93, %c0_94, %c0_95], %270 {strides = array<i32>} : memref<1x4x256xf32, #tpu.memory_space<vmem>>, vector<1x4x256xf32>,
    return
  }
  func.func @transform_0(%arg0: i32) -> (i32, i32, i32) {
    %c0_i32 = arith.constant 0 : i32
    %c0_i32_0 = arith.constant 0 : i32
    %c0_i32_1 = arith.constant 0 : i32
    return %arg0, %c0_i32, %c0_i32_0 : i32, i32, i32
  }
  func.func @transform_1(%arg0: i32) -> (i32, i32, i32) {
    %c0_i32 = arith.constant 0 : i32
    %c0_i32_0 = arith.constant 0 : i32
    %c0_i32_1 = arith.constant 0 : i32
    return %arg0, %c0_i32, %c0_i32_0 : i32, i32, i32
  }
  func.func @transform_2(%arg0: i32) -> (i32, i32, i32) {
    %c0_i32 = arith.constant 0 : i32
    %c0_i32_0 = arith.constant 0 : i32
    %c0_i32_1 = arith.constant 0 : i32
    return %arg0, %c0_i32, %c0_i32_0 : i32, i32, i32
  }
  func.func @transform_3(%arg0: i32) -> (i32, i32, i32) {
    %c0_i32 = arith.constant 0 : i32
    %c0_i32_0 = arith.constant 0 : i32
    %c0_i32_1 = arith.constant 0 : i32
    return %arg0, %c0_i32, %c0_i32_0 : i32, i32, i32
  }
  func.func @transform_4(%arg0: i32) -> (i32, i32) {
    %c0_i32 = arith.constant 0 : i32
    %c0_i32_0 = arith.constant 0 : i32
    %c0_i32_1 = arith.constant 0 : i32
    return %c0_i32, %c0_i32_0 : i32, i32
  }
  func.func @transform_5(%arg0: i32) -> (i32, i32) {
    %c0_i32 = arith.constant 0 : i32
    %c0_i32_0 = arith.constant 0 : i32
    %c0_i32_1 = arith.constant 0 : i32
    return %c0_i32, %c0_i32_0 : i32, i32
  }
  func.func @transform_6(%arg0: i32) -> (i32, i32) {
    %c0_i32 = arith.constant 0 : i32
    %c0_i32_0 = arith.constant 0 : i32
    %c0_i32_1 = arith.constant 0 : i32
    return %c0_i32, %c0_i32_0 : i32, i32
  }
  func.func @transform_7(%arg0: i32) -> (i32, i32) {
    %c0_i32 = arith.constant 0 : i32
    %c0_i32_0 = arith.constant 0 : i32
    %c0_i32_1 = arith.constant 0 : i32
    return %c0_i32, %c0_i32_0 : i32, i32
  }
  func.func @transform_8(%arg0: i32) -> (i32, i32) {
    %c0_i32 = arith.constant 0 : i32
    %c0_i32_0 = arith.constant 0 : i32
    %c0_i32_1 = arith.constant 0 : i32
    return %c0_i32, %c0_i32_0 : i32, i32
  }
  func.func @transform_9(%arg0: i32) -> (i32, i32) {
    %c0_i32 = arith.constant 0 : i32
    %c0_i32_0 = arith.constant 0 : i32
    %c0_i32_1 = arith.constant 0 : i32
    return %c0_i32, %c0_i32_0 : i32, i32
  }
  func.func @transform_10(%arg0: i32) -> (i32, i32) {
    %c0_i32 = arith.constant 0 : i32
    %c0_i32_0 = arith.constant 0 : i32
    %c0_i32_1 = arith.constant 0 : i32
    return %c0_i32, %c0_i32_0 : i32, i32
  }
  func.func @transform_11(%arg0: i32) -> (i32, i32) {
    %c0_i32 = arith.constant 0 : i32
    %c0_i32_0 = arith.constant 0 : i32
    %c0_i32_1 = arith.constant 0 : i32
    return %c0_i32, %c0_i32_0 : i32, i32
  }
  func.func @transform_12(%arg0: i32) -> (i32, i32) {
    %c0_i32 = arith.constant 0 : i32
    %c0_i32_0 = arith.constant 0 : i32
    %c0_i32_1 = arith.constant 0 : i32
    return %c0_i32, %c0_i32_0 : i32, i32
  }
  func.func @transform_13(%arg0: i32) -> (i32, i32) {
    %c0_i32 = arith.constant 0 : i32
    %c0_i32_0 = arith.constant 0 : i32
    %c0_i32_1 = arith.constant 0 : i32
    return %c0_i32, %c0_i32_0 : i32, i32
  }
  func.func @transform_14(%arg0: i32) -> (i32, i32) {
    %c0_i32 = arith.constant 0 : i32
    %c0_i32_0 = arith.constant 0 : i32
    %c0_i32_1 = arith.constant 0 : i32
    return %c0_i32, %c0_i32_0 : i32, i32
  }
  func.func @transform_15(%arg0: i32) -> (i32, i32, i32) {
    %c0_i32 = arith.constant 0 : i32
    %c0_i32_0 = arith.constant 0 : i32
    %c0_i32_1 = arith.constant 0 : i32
    return %arg0, %c0_i32, %c0_i32_0 : i32, i32, i32
  }
  func.func @transform_16(%arg0: i32) -> (i32, i32, i32) {
    %c0_i32 = arith.constant 0 : i32
    %c0_i32_0 = arith.constant 0 : i32
    %c0_i32_1 = arith.constant 0 : i32
    return %arg0, %c0_i32, %c0_i32_0 : i32, i32, i32
  }
  func.func @transform_17(%arg0: i32) -> (i32, i32, i32) {
    %c0_i32 = arith.constant 0 : i32
    %c0_i32_0 = arith.constant 0 : i32
    %c0_i32_1 = arith.constant 0 : i32
    return %arg0, %c0_i32, %c0_i32_0 : i32, i32, i32
  }
}

</mosaic_0001>

<llo_original>
// kernel: tpu_custom_call.1
$region0: #{tpu_custom_call.1}
  #allocation0 [shape = 'u32[]', space=smem, size = 0x4, offset = 0x4, fixed_abs, tag = 'smem constant byte address 0x4 - core index']
  #allocation1 [shape = 'u32[144,128]{1,0:T(1,128)}', space=vmem, size = 0x12000, scoped, tag = 'internal scratch']
  #allocation2 [shape = 'f32[16,256]{1,0:T(8,128)}', space=vmem, size = 0x4000, scoped, tag = 'scratch operand']
  #allocation3 [shape = 'bf16[144,256]{1,0:T(8,128)(2,1)}', space=vmem, size = 0x12000, scoped, tag = 'scratch operand']
  #allocation4 [shape = 'f32[1,1]{1,0:T(1,128)S(1)}', space=vmem, size = 0x200, scoped, tag = 'scoped memory for tpu_custom_call.1']
  %s0 = inlined_call_operand.vmem [shape: f32[2,4,256], index: 0, kind: input, shape index: {}]
  %s1 = inlined_call_operand.hbm [shape: f32[2,8,2048], index: 1, kind: input, shape index: {}]
  %s2 = inlined_call_operand.vmem [shape: f32[2,4,256], index: 2, kind: input, shape index: {}]
  %s3 = inlined_call_operand.vmem [shape: f32[2,4,256], index: 3, kind: input, shape index: {}]
  %s4 = inlined_call_operand.vmem [shape: f32[8,4], index: 4, kind: input, shape index: {}]
  %s5 = inlined_call_operand.hbm [shape: f32[8,8], index: 5, kind: input, shape index: {}]
  %s6 = inlined_call_operand.vmem [shape: f32[8,1], index: 6, kind: input, shape index: {}]
  %s7 = inlined_call_operand.vmem [shape: f32[8,1], index: 7, kind: input, shape index: {}]
  %s8 = inlined_call_operand.<no memory space> [shape: f32[1,1], index: 8, kind: input, shape index: {}]
  %s9 = inlined_call_operand.hbm [shape: bf16[16,144], index: 9, kind: input, shape index: {}]
  %s10 = inlined_call_operand.vmem [shape: f32[16,1], index: 10, kind: input, shape index: {}]
  %s11 = inlined_call_operand.hbm [shape: f32[4,256], index: 11, kind: input, shape index: {}]
  %s12 = inlined_call_operand.hbm [shape: f32[4,256], index: 12, kind: input, shape index: {}]
  %s13 = inlined_call_operand.hbm [shape: f32[4,256], index: 13, kind: input, shape index: {}]
  %s14 = inlined_call_operand.vmem [shape: bf16[9,256], index: 14, kind: input, shape index: {}]
  %s15 = inlined_call_operand.hbm [shape: f32[2,16,256], index: 15, kind: output, shape index: {0}]
  %s16 = inlined_call_operand.hbm [shape: f32[2,4,256], index: 16, kind: output, shape index: {1}]
  %s17 = inlined_call_operand.hbm [shape: f32[2,4,256], index: 17, kind: output, shape index: {2}]
  %18 = xla_tuple %s15, %s16, %s17
  %s19 = sld [smem:[#allocation0]]
  $region133: #{tpu_custom_call.1} parent=0
    _
  %s21 = ssub.s32 1, %s19
  %s22 = scalar_select 0, %s21, %s19
  %v23 = vstv %s8
  %24 = vst [vmem:[#allocation4] sm:$0x1] %v23
  $region1: #{tpu_custom_call.1} parent=0
    #allocation5 [shape = 'u8[131072]{0}', space=vmem, size = 0x20000, scoped, tag = 'input window, operand 1']
    #allocation6 [shape = 's32[2]{0}', space=sflag, size = 0x8, scoped, tag = 'scoped memory for tpu_custom_call.1']
    #allocation7 [shape = 's32[2]{0}', space=sflag, size = 0x8, scoped, tag = 'scoped memory for tpu_custom_call.1']
    #allocation8 [shape = 'u8[4096]{0}', space=vmem, size = 0x1000, scoped, tag = 'input window, operand 5, single buffered']
    #allocation9 [shape = 's32[1]{0}', space=sflag, size = 0x4, scoped, tag = 'scoped memory for tpu_custom_call.1']
    #allocation10 [shape = 'u8[8192]{0}', space=vmem, size = 0x2000, scoped, tag = 'input window, operand 9, single buffered']
    #allocation11 [shape = 'u8[4096]{0}', space=vmem, size = 0x1000, scoped, tag = 'input window, operand 11, single buffered']
    #allocation12 [shape = 's32[1]{0}', space=sflag, size = 0x4, scoped, tag = 'scoped memory for tpu_custom_call.1']
    #allocation13 [shape = 'u8[4096]{0}', space=vmem, size = 0x1000, scoped, tag = 'input window, operand 12, single buffered']
    #allocation14 [shape = 'u8[4096]{0}', space=vmem, size = 0x1000, scoped, tag = 'input window, operand 13, single buffered']
    #allocation15 [shape = 's32[1]{0}', space=sflag, size = 0x4, scoped, tag = 'scoped memory for tpu_custom_call.1']
    #allocation16 [shape = 'u8[32768]{0}', space=vmem, size = 0x8000, scoped, tag = 'output window, operand 0']
    #allocation17 [shape = 'u8[8192]{0}', space=vmem, size = 0x2000, scoped, tag = 'output window, operand 1']
    #allocation18 [shape = 's32[2]{0}', space=sflag, size = 0x8, scoped, tag = 'scoped memory for tpu_custom_call.1']
    #allocation19 [shape = 'u8[8192]{0}', space=vmem, size = 0x2000, scoped, tag = 'output window, operand 2']
    %25 = vsyncpa [#allocation6], 0
    %s26 = scalar_lea.sflag [#allocation6], 1
    %27 = vsyncpa %s26, 0
    %28 = vsyncpa [#allocation9], 0
    %29 = vsyncpa [#allocation12], 0
    %30 = vsyncpa [#allocation15], 0
    %31 = vsyncpa [#allocation7], 0
    %s32 = scalar_lea.sflag [#allocation7], 1
    %33 = vsyncpa %s32, 0
    %34 = vsyncpa [#allocation18], 0
    %s35 = scalar_lea.sflag [#allocation18], 1
    %36 = vsyncpa %s35, 0
    loop: start=0, step=1, limit=4
    $region2: #{tpu_custom_call.1} parent=1 // loop_pre_header
      _
    $region3: #{tpu_custom_call.1} parent=1 // loop_header
      %s38 = sphi 0, %s42
      %p39 = scmp.ge.s32.totalorder %s38, 4
      %s48 = sphi 0, %s50
      %s51 = sphi 0, %s48
      %s52 = sphi 0, %s51
      %s68 = sphi 0, %s52
      %s74 = sphi 0, %s76
      %s77 = sphi 0, %s74
      %s78 = sphi 0, %s77
      %s94 = sphi 0, %s78
      %s100 = sphi 0, %s102
      %s103 = sphi 0, %s100
      %s104 = sphi 0, %s103
      %s120 = sphi 0, %s104
      %s126 = sphi 0, %s128
      %s129 = sphi 0, %s126
      %s130 = sphi 0, %s129
      %s146 = sphi 0, %s130
      %s150 = sphi 0, %s150
      %s152 = sphi 0, %s150
      %s153 = sphi 0, %s152
      %s167 = sphi 0, %s153
      %s171 = sphi 0, %s171
      %s173 = sphi 0, %s171
      %s174 = sphi 0, %s173
      %s188 = sphi 0, %s174
      %s192 = sphi 0, %s192
      %s194 = sphi 0, %s192
      %s195 = sphi 0, %s194
      %s209 = sphi 0, %s195
      %s213 = sphi 0, %s213
      %s215 = sphi 0, %s213
      %s216 = sphi 0, %s215
      %s230 = sphi 0, %s216
      %s234 = sphi 0, %s234
      %s236 = sphi 0, %s234
      %s237 = sphi 0, %s236
      %s251 = sphi 0, %s237
      %s255 = sphi 0, %s255
      %s257 = sphi 0, %s255
      %s258 = sphi 0, %s257
      %s272 = sphi 0, %s258
      %s276 = sphi 0, %s276
      %s278 = sphi 0, %s276
      %s279 = sphi 0, %s278
      %s293 = sphi 0, %s279
      %s297 = sphi 0, %s297
      %s299 = sphi 0, %s297
      %s300 = sphi 0, %s299
      %s314 = sphi 0, %s300
      %s318 = sphi 0, %s318
      %s320 = sphi 0, %s318
      %s321 = sphi 0, %s320
      %s335 = sphi 0, %s321
      %s339 = sphi 0, %s339
      %s341 = sphi 0, %s339
      %s342 = sphi 0, %s341
      %s356 = sphi 0, %s342
      %s360 = sphi 0, %s360
      %s362 = sphi 0, %s360
      %s363 = sphi 0, %s362
      %s377 = sphi 0, %s363
      %s383 = sphi 0, %s385
      %s386 = sphi 0, %s383
      %s387 = sphi 0, %s386
      %s403 = sphi 0, %s387
      %s409 = sphi 0, %s411
      %s412 = sphi 0, %s409
      %s413 = sphi 0, %s412
      %s429 = sphi 0, %s413
      %s435 = sphi 0, %s437
      %s438 = sphi 0, %s435
      %s439 = sphi 0, %s438
      %s455 = sphi 0, %s439
    $region4: #{tpu_custom_call.1} parent=1 // loop_header_branch
      %41 = sbr.rel (%p39) target = $region8
    $region5: #{tpu_custom_call.1} parent=1 // loop_body
      %s43 = ssub.s32 %s38, 1
      %s44 = ssub.s32 %s38, 2
      %s45 = sadd.s32 %s38, 1
      %s46 = ssub.s32 %s38, %s45
      %p47 = scmp.eq.s32.totalorder %s46, 0
      %s49 = sadd.s32 %s48, 1
      %s50 = scalar_select %p47, %s48, %s49
      %p53 = pneg %p47
      %p54 = scmp.eq.s32.totalorder %s38, 1
      %p55 = por %p53, %p54
      %p56 = scmp.ne.s32.totalorder %s48, %s51
      %p57 = scmp.eq.s32.totalorder %s38, 0
      %p58 = por %p56, %p57
      %p59 = scmp.ne.s32.totalorder %s48, %s51
      %p60 = scmp.eq.s32.totalorder %s43, 1
      %p61 = por %p59, %p60
      %p62 = scmp.ne.s32.totalorder %s51, %s52
      %p63 = scmp.eq.s32.totalorder %s43, 0
      %p64 = por %p62, %p63
      %p65 = scmp.ne.s32.totalorder %s51, %s52
      %p66 = scmp.eq.s32.totalorder %s44, 1
      %p67 = por %p65, %p66
      %p69 = scmp.ne.s32.totalorder %s52, %s68
      %p70 = scmp.eq.s32.totalorder %s44, 0
      %p71 = por %p69, %p70
      %s72 = ssub.s32 %s38, %s45
      %p73 = scmp.eq.s32.totalorder %s72, 0
      %s75 = sadd.s32 %s74, 1
      %s76 = scalar_select %p73, %s74, %s75
      %p79 = pneg %p73
      %p80 = scmp.eq.s32.totalorder %s38, 1
      %p81 = por %p79, %p80
      %p82 = scmp.ne.s32.totalorder %s74, %s77
      %p83 = scmp.eq.s32.totalorder %s38, 0
      %p84 = por %p82, %p83
      %p85 = scmp.ne.s32.totalorder %s74, %s77
      %p86 = scmp.eq.s32.totalorder %s43, 1
      %p87 = por %p85, %p86
      %p88 = scmp.ne.s32.totalorder %s77, %s78
      %p89 = scmp.eq.s32.totalorder %s43, 0
      %p90 = por %p88, %p89
      %p91 = scmp.ne.s32.totalorder %s77, %s78
      %p92 = scmp.eq.s32.totalorder %s44, 1
      %p93 = por %p91, %p92
      %p95 = scmp.ne.s32.totalorder %s78, %s94
      %p96 = scmp.eq.s32.totalorder %s44, 0
      %p97 = por %p95, %p96
      %s98 = ssub.s32 %s38, %s45
      %p99 = scmp.eq.s32.totalorder %s98, 0
      %s101 = sadd.s32 %s100, 1
      %s102 = scalar_select %p99, %s100, %s101
      %p105 = pneg %p99
      %p106 = scmp.eq.s32.totalorder %s38, 1
      %p107 = por %p105, %p106
      %p108 = scmp.ne.s32.totalorder %s100, %s103
      %p109 = scmp.eq.s32.totalorder %s38, 0
      %p110 = por %p108, %p109
      %p111 = scmp.ne.s32.totalorder %s100, %s103
      %p112 = scmp.eq.s32.totalorder %s43, 1
      %p113 = por %p111, %p112
      %p114 = scmp.ne.s32.totalorder %s103, %s104
      %p115 = scmp.eq.s32.totalorder %s43, 0
      %p116 = por %p114, %p115
      %p117 = scmp.ne.s32.totalorder %s103, %s104
      %p118 = scmp.eq.s32.totalorder %s44, 1
      %p119 = por %p117, %p118
      %p121 = scmp.ne.s32.totalorder %s104, %s120
      %p122 = scmp.eq.s32.totalorder %s44, 0
      %p123 = por %p121, %p122
      %s124 = ssub.s32 %s38, %s45
      %p125 = scmp.eq.s32.totalorder %s124, 0
      %s127 = sadd.s32 %s126, 1
      %s128 = scalar_select %p125, %s126, %s127
      %p131 = pneg %p125
      %p132 = scmp.eq.s32.totalorder %s38, 1
      %p133 = por %p131, %p132
      %p134 = scmp.ne.s32.totalorder %s126, %s129
      %p135 = scmp.eq.s32.totalorder %s38, 0
      %p136 = por %p134, %p135
      %p137 = scmp.ne.s32.totalorder %s126, %s129
      %p138 = scmp.eq.s32.totalorder %s43, 1
      %p139 = por %p137, %p138
      %p140 = scmp.ne.s32.totalorder %s129, %s130
      %p141 = scmp.eq.s32.totalorder %s43, 0
      %p142 = por %p140, %p141
      %p143 = scmp.ne.s32.totalorder %s129, %s130
      %p144 = scmp.eq.s32.totalorder %s44, 1
      %p145 = por %p143, %p144
      %p147 = scmp.ne.s32.totalorder %s130, %s146
      %p148 = scmp.eq.s32.totalorder %s44, 0
      %p149 = por %p147, %p148
      %s151 = sadd.s32 %s150, 1
      %p154 = scmp.eq.s32.totalorder %s38, 1
      %p155 = scmp.ne.s32.totalorder %s150, %s152
      %p156 = scmp.eq.s32.totalorder %s38, 0
      %p157 = por %p155, %p156
      %p158 = scmp.ne.s32.totalorder %s150, %s152
      %p159 = scmp.eq.s32.totalorder %s43, 1
      %p160 = por %p158, %p159
      %p161 = scmp.ne.s32.totalorder %s152, %s153
      %p162 = scmp.eq.s32.totalorder %s43, 0
      %p163 = por %p161, %p162
      %p164 = scmp.ne.s32.totalorder %s152, %s153
      %p165 = scmp.eq.s32.totalorder %s44, 1
      %p166 = por %p164, %p165
      %p168 = scmp.ne.s32.totalorder %s153, %s167
      %p169 = scmp.eq.s32.totalorder %s44, 0
      %p170 = por %p168, %p169
      %s172 = sadd.s32 %s171, 1
      %p175 = scmp.eq.s32.totalorder %s38, 1
      %p176 = scmp.ne.s32.totalorder %s171, %s173
      %p177 = scmp.eq.s32.totalorder %s38, 0
      %p178 = por %p176, %p177
      %p179 = scmp.ne.s32.totalorder %s171, %s173
      %p180 = scmp.eq.s32.totalorder %s43, 1
      %p181 = por %p179, %p180
      %p182 = scmp.ne.s32.totalorder %s173, %s174
      %p183 = scmp.eq.s32.totalorder %s43, 0
      %p184 = por %p182, %p183
      %p185 = scmp.ne.s32.totalorder %s173, %s174
      %p186 = scmp.eq.s32.totalorder %s44, 1
      %p187 = por %p185, %p186
      %p189 = scmp.ne.s32.totalorder %s174, %s188
      %p190 = scmp.eq.s32.totalorder %s44, 0
      %p191 = por %p189, %p190
      %s193 = sadd.s32 %s192, 1
      %p196 = scmp.eq.s32.totalorder %s38, 1
      %p197 = scmp.ne.s32.totalorder %s192, %s194
      %p198 = scmp.eq.s32.totalorder %s38, 0
      %p199 = por %p197, %p198
      %p200 = scmp.ne.s32.totalorder %s192, %s194
      %p201 = scmp.eq.s32.totalorder %s43, 1
      %p202 = por %p200, %p201
      %p203 = scmp.ne.s32.totalorder %s194, %s195
      %p204 = scmp.eq.s32.totalorder %s43, 0
      %p205 = por %p203, %p204
      %p206 = scmp.ne.s32.totalorder %s194, %s195
      %p207 = scmp.eq.s32.totalorder %s44, 1
      %p208 = por %p206, %p207
      %p210 = scmp.ne.s32.totalorder %s195, %s209
      %p211 = scmp.eq.s32.totalorder %s44, 0
      %p212 = por %p210, %p211
      %s214 = sadd.s32 %s213, 1
      %p217 = scmp.eq.s32.totalorder %s38, 1
      %p218 = scmp.ne.s32.totalorder %s213, %s215
      %p219 = scmp.eq.s32.totalorder %s38, 0
      %p220 = por %p218, %p219
      %p221 = scmp.ne.s32.totalorder %s213, %s215
      %p222 = scmp.eq.s32.totalorder %s43, 1
      %p223 = por %p221, %p222
      %p224 = scmp.ne.s32.totalorder %s215, %s216
      %p225 = scmp.eq.s32.totalorder %s43, 0
      %p226 = por %p224, %p225
      %p227 = scmp.ne.s32.totalorder %s215, %s216
      %p228 = scmp.eq.s32.totalorder %s44, 1
      %p229 = por %p227, %p228
      %p231 = scmp.ne.s32.totalorder %s216, %s230
      %p232 = scmp.eq.s32.totalorder %s44, 0
      %p233 = por %p231, %p232
      %s235 = sadd.s32 %s234, 1
      %p238 = scmp.eq.s32.totalorder %s38, 1
      %p239 = scmp.ne.s32.totalorder %s234, %s236
      %p240 = scmp.eq.s32.totalorder %s38, 0
      %p241 = por %p239, %p240
      %p242 = scmp.ne.s32.totalorder %s234, %s236
      %p243 = scmp.eq.s32.totalorder %s43, 1
      %p244 = por %p242, %p243
      %p245 = scmp.ne.s32.totalorder %s236, %s237
      %p246 = scmp.eq.s32.totalorder %s43, 0
      %p247 = por %p245, %p246
      %p248 = scmp.ne.s32.totalorder %s236, %s237
      %p249 = scmp.eq.s32.totalorder %s44, 1
      %p250 = por %p248, %p249
      %p252 = scmp.ne.s32.totalorder %s237, %s251
      %p253 = scmp.eq.s32.totalorder %s44, 0
      %p254 = por %p252, %p253
      %s256 = sadd.s32 %s255, 1
      %p259 = scmp.eq.s32.totalorder %s38, 1
      %p260 = scmp.ne.s32.totalorder %s255, %s257
      %p261 = scmp.eq.s32.totalorder %s38, 0
      %p262 = por %p260, %p261
      %p263 = scmp.ne.s32.totalorder %s255, %s257
      %p264 = scmp.eq.s32.totalorder %s43, 1
      %p265 = por %p263, %p264
      %p266 = scmp.ne.s32.totalorder %s257, %s258
      %p267 = scmp.eq.s32.totalorder %s43, 0
      %p268 = por %p266, %p267
      %p269 = scmp.ne.s32.totalorder %s257, %s258
      %p270 = scmp.eq.s32.totalorder %s44, 1
      %p271 = por %p269, %p270
      %p273 = scmp.ne.s32.totalorder %s258, %s272
      %p274 = scmp.eq.s32.totalorder %s44, 0
      %p275 = por %p273, %p274
      %s277 = sadd.s32 %s276, 1
      %p280 = scmp.eq.s32.totalorder %s38, 1
      %p281 = scmp.ne.s32.totalorder %s276, %s278
      %p282 = scmp.eq.s32.totalorder %s38, 0
      %p283 = por %p281, %p282
      %p284 = scmp.ne.s32.totalorder %s276, %s278
      %p285 = scmp.eq.s32.totalorder %s43, 1
      %p286 = por %p284, %p285
      %p287 = scmp.ne.s32.totalorder %s278, %s279
      %p288 = scmp.eq.s32.totalorder %s43, 0
      %p289 = por %p287, %p288
      %p290 = scmp.ne.s32.totalorder %s278, %s279
      %p291 = scmp.eq.s32.totalorder %s44, 1
      %p292 = por %p290, %p291
      %p294 = scmp.ne.s32.totalorder %s279, %s293
      %p295 = scmp.eq.s32.totalorder %s44, 0
      %p296 = por %p294, %p295
      %s298 = sadd.s32 %s297, 1
      %p301 = scmp.eq.s32.totalorder %s38, 1
      %p302 = scmp.ne.s32.totalorder %s297, %s299
      %p303 = scmp.eq.s32.totalorder %s38, 0
      %p304 = por %p302, %p303
      %p305 = scmp.ne.s32.totalorder %s297, %s299
      %p306 = scmp.eq.s32.totalorder %s43, 1
      %p307 = por %p305, %p306
      %p308 = scmp.ne.s32.totalorder %s299, %s300
      %p309 = scmp.eq.s32.totalorder %s43, 0
      %p310 = por %p308, %p309
      %p311 = scmp.ne.s32.totalorder %s299, %s300
      %p312 = scmp.eq.s32.totalorder %s44, 1
      %p313 = por %p311, %p312
      %p315 = scmp.ne.s32.totalorder %s300, %s314
      %p316 = scmp.eq.s32.totalorder %s44, 0
      %p317 = por %p315, %p316
      %s319 = sadd.s32 %s318, 1
      %p322 = scmp.eq.s32.totalorder %s38, 1
      %p323 = scmp.ne.s32.totalorder %s318, %s320
      %p324 = scmp.eq.s32.totalorder %s38, 0
      %p325 = por %p323, %p324
      %p326 = scmp.ne.s32.totalorder %s318, %s320
      %p327 = scmp.eq.s32.totalorder %s43, 1
      %p328 = por %p326, %p327
      %p329 = scmp.ne.s32.totalorder %s320, %s321
      %p330 = scmp.eq.s32.totalorder %s43, 0
      %p331 = por %p329, %p330
      %p332 = scmp.ne.s32.totalorder %s320, %s321
      %p333 = scmp.eq.s32.totalorder %s44, 1
      %p334 = por %p332, %p333
      %p336 = scmp.ne.s32.totalorder %s321, %s335
      %p337 = scmp.eq.s32.totalorder %s44, 0
      %p338 = por %p336, %p337
      %s340 = sadd.s32 %s339, 1
      %p343 = scmp.eq.s32.totalorder %s38, 1
      %p344 = scmp.ne.s32.totalorder %s339, %s341
      %p345 = scmp.eq.s32.totalorder %s38, 0
      %p346 = por %p344, %p345
      %p347 = scmp.ne.s32.totalorder %s339, %s341
      %p348 = scmp.eq.s32.totalorder %s43, 1
      %p349 = por %p347, %p348
      %p350 = scmp.ne.s32.totalorder %s341, %s342
      %p351 = scmp.eq.s32.totalorder %s43, 0
      %p352 = por %p350, %p351
      %p353 = scmp.ne.s32.totalorder %s341, %s342
      %p354 = scmp.eq.s32.totalorder %s44, 1
      %p355 = por %p353, %p354
      %p357 = scmp.ne.s32.totalorder %s342, %s356
      %p358 = scmp.eq.s32.totalorder %s44, 0
      %p359 = por %p357, %p358
      %s361 = sadd.s32 %s360, 1
      %p364 = scmp.eq.s32.totalorder %s38, 1
      %p365 = scmp.ne.s32.totalorder %s360, %s362
      %p366 = scmp.eq.s32.totalorder %s38, 0
      %p367 = por %p365, %p366
      %p368 = scmp.ne.s32.totalorder %s360, %s362
      %p369 = scmp.eq.s32.totalorder %s43, 1
      %p370 = por %p368, %p369
      %p371 = scmp.ne.s32.totalorder %s362, %s363
      %p372 = scmp.eq.s32.totalorder %s43, 0
      %p373 = por %p371, %p372
      %p374 = scmp.ne.s32.totalorder %s362, %s363
      %p375 = scmp.eq.s32.totalorder %s44, 1
      %p376 = por %p374, %p375
      %p378 = scmp.ne.s32.totalorder %s363, %s377
      %p379 = scmp.eq.s32.totalorder %s44, 0
      %p380 = por %p378, %p379
      %s381 = ssub.s32 %s38, %s45
      %p382 = scmp.eq.s32.totalorder %s381, 0
      %s384 = sadd.s32 %s383, 1
      %s385 = scalar_select %p382, %s383, %s384
      %p388 = pneg %p382
      %p389 = scmp.eq.s32.totalorder %s38, 1
      %p390 = por %p388, %p389
      %p391 = scmp.ne.s32.totalorder %s383, %s386
      %p392 = scmp.eq.s32.totalorder %s38, 0
      %p393 = por %p391, %p392
      %p394 = scmp.ne.s32.totalorder %s383, %s386
      %p395 = scmp.eq.s32.totalorder %s43, 1
      %p396 = por %p394, %p395
      %p397 = scmp.ne.s32.totalorder %s386, %s387
      %p398 = scmp.eq.s32.totalorder %s43, 0
      %p399 = por %p397, %p398
      %p400 = scmp.ne.s32.totalorder %s386, %s387
      %p401 = scmp.eq.s32.totalorder %s44, 1
      %p402 = por %p400, %p401
      %p404 = scmp.ne.s32.totalorder %s387, %s403
      %p405 = scmp.eq.s32.totalorder %s44, 0
      %p406 = por %p404, %p405
      %s407 = ssub.s32 %s38, %s45
      %p408 = scmp.eq.s32.totalorder %s407, 0
      %s410 = sadd.s32 %s409, 1
      %s411 = scalar_select %p408, %s409, %s410
      %p414 = pneg %p408
      %p415 = scmp.eq.s32.totalorder %s38, 1
      %p416 = por %p414, %p415
      %p417 = scmp.ne.s32.totalorder %s409, %s412
      %p418 = scmp.eq.s32.totalorder %s38, 0
      %p419 = por %p417, %p418
      %p420 = scmp.ne.s32.totalorder %s409, %s412
      %p421 = scmp.eq.s32.totalorder %s43, 1
      %p422 = por %p420, %p421
      %p423 = scmp.ne.s32.totalorder %s412, %s413
      %p424 = scmp.eq.s32.totalorder %s43, 0
      %p425 = por %p423, %p424
      %p426 = scmp.ne.s32.totalorder %s412, %s413
      %p427 = scmp.eq.s32.totalorder %s44, 1
      %p428 = por %p426, %p427
      %p430 = scmp.ne.s32.totalorder %s413, %s429
      %p431 = scmp.eq.s32.totalorder %s44, 0
      %p432 = por %p430, %p431
      %s433 = ssub.s32 %s38, %s45
      %p434 = scmp.eq.s32.totalorder %s433, 0
      %s436 = sadd.s32 %s435, 1
      %s437 = scalar_select %p434, %s435, %s436
      %p440 = pneg %p434
      %p441 = scmp.eq.s32.totalorder %s38, 1
      %p442 = por %p440, %p441
      %p443 = scmp.ne.s32.totalorder %s435, %s438
      %p444 = scmp.eq.s32.totalorder %s38, 0
      %p445 = por %p443, %p444
      %p446 = scmp.ne.s32.totalorder %s435, %s438
      %p447 = scmp.eq.s32.totalorder %s43, 1
      %p448 = por %p446, %p447
      %p449 = scmp.ne.s32.totalorder %s438, %s439
      %p450 = scmp.eq.s32.totalorder %s43, 0
      %p451 = por %p449, %p450
      %p452 = scmp.ne.s32.totalorder %s438, %s439
      %p453 = scmp.eq.s32.totalorder %s44, 1
      %p454 = por %p452, %p453
      %p456 = scmp.ne.s32.totalorder %s439, %s455
      %p457 = scmp.eq.s32.totalorder %s44, 0
      %p458 = por %p456, %p457
      %p459 = scmp.le.s32.totalorder 1, %s38
      %p460 = scmp.lt.s32.totalorder %s38, 3
      %p461 = pnand %p459, %p460
      %p462 = pneg %p461
      // Predicated region
      $region9: #{tpu_custom_call.1} parent=5 // pred_check
        _
      $region10: #{tpu_custom_call.1} parent=5 // pred_check_branch
        %464 = sbr.rel (%p461) target = $region12
      $region11: #{tpu_custom_call.1} parent=5 // pred_region
        %s465 = ssub.s32 %s38, 1
        // Predicated region
        $region13: #{tpu_custom_call.1} parent=11 // pred_check
          %p466 = pneg %p163
        $region14: #{tpu_custom_call.1} parent=11 // pred_check_branch
          %468 = sbr.rel (%p466) target = $region16
        $region15: #{tpu_custom_call.1} parent=11 // pred_region
          _
        $region16: #{tpu_custom_call.1} parent=11 // pred_fallthru
          _
        // Predicated region
        $region17: #{tpu_custom_call.1} parent=11 // pred_check
          %p469 = pneg %p184
        $region18: #{tpu_custom_call.1} parent=11 // pred_check_branch
          %471 = sbr.rel (%p469) target = $region20
        $region19: #{tpu_custom_call.1} parent=11 // pred_region
          %s473 = ssub.s32 128, 128
          %474 = vsyncadd [#allocation9], %s473
          %s476 = sshll.u32 [#allocation8], 4
          %s477 = int_to_ptr.vmem [resolvable:$true] %s476
          %479 = dma.hbm_to_vmem [thread:$0]  %s5, 128, %s477, [#allocation9]
        $region20: #{tpu_custom_call.1} parent=11 // pred_fallthru
          _
        // Predicated region
        $region21: #{tpu_custom_call.1} parent=11 // pred_check
          %p480 = pneg %p205
        $region22: #{tpu_custom_call.1} parent=11 // pred_check_branch
          %482 = sbr.rel (%p480) target = $region24
        $region23: #{tpu_custom_call.1} parent=11 // pred_region
          _
        $region24: #{tpu_custom_call.1} parent=11 // pred_fallthru
          _
        // Predicated region
        $region25: #{tpu_custom_call.1} parent=11 // pred_check
          %p483 = pneg %p226
        $region26: #{tpu_custom_call.1} parent=11 // pred_check_branch
          %485 = sbr.rel (%p483) target = $region28
        $region27: #{tpu_custom_call.1} parent=11 // pred_region
          _
        $region28: #{tpu_custom_call.1} parent=11 // pred_fallthru
          _
        // Predicated region
        $region29: #{tpu_custom_call.1} parent=11 // pred_check
          %p486 = pneg %p247
        $region30: #{tpu_custom_call.1} parent=11 // pred_check_branch
          %488 = sbr.rel (%p486) target = $region32
        $region31: #{tpu_custom_call.1} parent=11 // pred_region
          _
        $region32: #{tpu_custom_call.1} parent=11 // pred_fallthru
          _
        // Predicated region
        $region33: #{tpu_custom_call.1} parent=11 // pred_check
          %p489 = pneg %p268
        $region34: #{tpu_custom_call.1} parent=11 // pred_check_branch
          %491 = sbr.rel (%p489) target = $region36
        $region35: #{tpu_custom_call.1} parent=11 // pred_region
          %s493 = ssub.s32 256, 256
          %494 = vsyncadd [#allocation9], %s493
          %s495 = sshll.u32 [#allocation10], 4
          %s496 = int_to_ptr.vmem [resolvable:$true] %s495
          %501 = dma.hbm_to_vmem [thread:$0]  %s9, 256, %s496, [#allocation9], 128, 128, 8
        $region36: #{tpu_custom_call.1} parent=11 // pred_fallthru
          _
        // Predicated region
        $region37: #{tpu_custom_call.1} parent=11 // pred_check
          %p502 = pneg %p289
        $region38: #{tpu_custom_call.1} parent=11 // pred_check_branch
          %504 = sbr.rel (%p502) target = $region40
        $region39: #{tpu_custom_call.1} parent=11 // pred_region
          _
        $region40: #{tpu_custom_call.1} parent=11 // pred_fallthru
          _
        // Predicated region
        $region41: #{tpu_custom_call.1} parent=11 // pred_check
          %p505 = pneg %p310
        $region42: #{tpu_custom_call.1} parent=11 // pred_check_branch
          %507 = sbr.rel (%p505) target = $region44
        $region43: #{tpu_custom_call.1} parent=11 // pred_region
          %s509 = ssub.s32 128, 128
          %510 = vsyncadd [#allocation12], %s509
          %s512 = sshll.u32 [#allocation11], 4
          %s513 = int_to_ptr.vmem [resolvable:$true] %s512
          %515 = dma.hbm_to_vmem [thread:$0]  %s11, 128, %s513, [#allocation12]
        $region44: #{tpu_custom_call.1} parent=11 // pred_fallthru
          _
        // Predicated region
        $region45: #{tpu_custom_call.1} parent=11 // pred_check
          %p516 = pneg %p331
        $region46: #{tpu_custom_call.1} parent=11 // pred_check_branch
          %518 = sbr.rel (%p516) target = $region48
        $region47: #{tpu_custom_call.1} parent=11 // pred_region
          %s520 = ssub.s32 128, 128
          %521 = vsyncadd [#allocation12], %s520
          %s523 = sshll.u32 [#allocation13], 4
          %s524 = int_to_ptr.vmem [resolvable:$true] %s523
          %526 = dma.hbm_to_vmem [thread:$0]  %s12, 128, %s524, [#allocation12]
        $region48: #{tpu_custom_call.1} parent=11 // pred_fallthru
          _
        // Predicated region
        $region49: #{tpu_custom_call.1} parent=11 // pred_check
          %p527 = pneg %p352
        $region50: #{tpu_custom_call.1} parent=11 // pred_check_branch
          %529 = sbr.rel (%p527) target = $region52
        $region51: #{tpu_custom_call.1} parent=11 // pred_region
          %s531 = ssub.s32 128, 128
          %532 = vsyncadd [#allocation15], %s531
          %s534 = sshll.u32 [#allocation14], 4
          %s535 = int_to_ptr.vmem [resolvable:$true] %s534
          %537 = dma.hbm_to_vmem [thread:$0]  %s13, 128, %s535, [#allocation15]
        $region52: #{tpu_custom_call.1} parent=11 // pred_fallthru
          _
        // Predicated region
        $region53: #{tpu_custom_call.1} parent=11 // pred_check
          %p538 = pneg %p373
        $region54: #{tpu_custom_call.1} parent=11 // pred_check_branch
          %540 = sbr.rel (%p538) target = $region56
        $region55: #{tpu_custom_call.1} parent=11 // pred_region
          _
        $region56: #{tpu_custom_call.1} parent=11 // pred_fallthru
          _
      $region12: #{tpu_custom_call.1} parent=5 // pred_fallthru
        _
      %p541 = scmp.lt.s32.totalorder %s38, 2
      // Predicated region
      $region57: #{tpu_custom_call.1} parent=5 // pred_check
        %p542 = pneg %p541
      $region58: #{tpu_custom_call.1} parent=5 // pred_check_branch
        %544 = sbr.rel (%p542) target = $region60
      $region59: #{tpu_custom_call.1} parent=5 // pred_region
        // Predicated region
        $region61: #{tpu_custom_call.1} parent=59 // pred_check
          %p545 = pneg %p58
        $region62: #{tpu_custom_call.1} parent=59 // pred_check_branch
          %547 = sbr.rel (%p545) target = $region64
        $region63: #{tpu_custom_call.1} parent=59 // pred_region
          %p548 = scmp.lt.s32.totalorder %s38, 1
          %s549 = scalar_select %p548, %s38, 1
          %s550 = smul.addr %s549, 2
          %s551 = smul.addr %s550, 4
          %s552 = scalar_lea.vmem %s0, %s551
        $region64: #{tpu_custom_call.1} parent=59 // pred_fallthru
          _
        // Predicated region
        $region65: #{tpu_custom_call.1} parent=59 // pred_check
          %p553 = pneg %p84
        $region66: #{tpu_custom_call.1} parent=59 // pred_check_branch
          %555 = sbr.rel (%p553) target = $region68
        $region67: #{tpu_custom_call.1} parent=59 // pred_region
          %s556 = sand.u32 %s74, 1
          %s557 = scalar_lea.sflag [#allocation6], %s556
          %s558 = sand.u32 %s74, 1
          %s559 = smul.addr %s558, 128
          %s560 = scalar_lea.vmem [#allocation5], %s559
          %s562 = ssub.s32 2048, 2048
          %563 = vsyncadd %s557, %s562
          %s564 = smul.addr %s38, 16
          %s565 = smul.addr %s564, 128
          %s566 = scalar_lea.hbm %s1, %s565
          %s568 = sshll.u32 %s560, 4
          %s569 = int_to_ptr.vmem [resolvable:$true] %s568
          %571 = dma.hbm_to_vmem [thread:$0]  %s566, 2048, %s569, %s557
        $region68: #{tpu_custom_call.1} parent=59 // pred_fallthru
          _
        // Predicated region
        $region69: #{tpu_custom_call.1} parent=59 // pred_check
          %p572 = pneg %p110
        $region70: #{tpu_custom_call.1} parent=59 // pred_check_branch
          %574 = sbr.rel (%p572) target = $region72
        $region71: #{tpu_custom_call.1} parent=59 // pred_region
          %p575 = scmp.lt.s32.totalorder %s38, 1
          %s576 = scalar_select %p575, %s38, 1
          %s577 = smul.addr %s576, 2
          %s578 = smul.addr %s577, 4
          %s579 = scalar_lea.vmem %s2, %s578
        $region72: #{tpu_custom_call.1} parent=59 // pred_fallthru
          _
        // Predicated region
        $region73: #{tpu_custom_call.1} parent=59 // pred_check
          %p580 = pneg %p136
        $region74: #{tpu_custom_call.1} parent=59 // pred_check_branch
          %582 = sbr.rel (%p580) target = $region76
        $region75: #{tpu_custom_call.1} parent=59 // pred_region
          %p583 = scmp.lt.s32.totalorder %s38, 1
          %s584 = scalar_select %p583, %s38, 1
          %s585 = smul.addr %s584, 2
          %s586 = smul.addr %s585, 4
          %s587 = scalar_lea.vmem %s3, %s586
        $region76: #{tpu_custom_call.1} parent=59 // pred_fallthru
          _
      $region60: #{tpu_custom_call.1} parent=5 // pred_fallthru
        _
      %p588 = scmp.le.s32.totalorder 1, %s38
      %p589 = scmp.lt.s32.totalorder %s38, 3
      %p590 = pnand %p588, %p589
      %p591 = pneg %p590
      // Predicated region
      $region77: #{tpu_custom_call.1} parent=5 // pred_check
        _
      $region78: #{tpu_custom_call.1} parent=5 // pred_check_branch
        %593 = sbr.rel (%p590) target = $region80
      $region79: #{tpu_custom_call.1} parent=5 // pred_region
        %s594 = ssub.s32 %s38, 1
        %s595 = sand.u32 %s77, 1
        %s596 = scalar_lea.sflag [#allocation6], %s595
        %s597 = sand.u32 %s77, 1
        %s598 = smul.addr %s597, 128
        %s599 = scalar_lea.vmem [#allocation5], %s598
        // Predicated region
        $region81: #{tpu_custom_call.1} parent=79 // pred_check
          %p600 = pneg %p90
        $region82: #{tpu_custom_call.1} parent=79 // pred_check_branch
          %602 = sbr.rel (%p600) target = $region84
        $region83: #{tpu_custom_call.1} parent=79 // pred_region
          %603 = dma.done %s596, 2048
        $region84: #{tpu_custom_call.1} parent=79 // pred_fallthru
          _
        // Predicated region
        $region85: #{tpu_custom_call.1} parent=79 // pred_check
          %p604 = pneg %p184
        $region86: #{tpu_custom_call.1} parent=79 // pred_check_branch
          %606 = sbr.rel (%p604) target = $region88
        $region87: #{tpu_custom_call.1} parent=79 // pred_region
          %607 = dma.done [#allocation9], 128
        $region88: #{tpu_custom_call.1} parent=79 // pred_fallthru
          _
        // Predicated region
        $region89: #{tpu_custom_call.1} parent=79 // pred_check
          %p608 = pneg %p268
        $region90: #{tpu_custom_call.1} parent=79 // pred_check_branch
          %610 = sbr.rel (%p608) target = $region92
        $region91: #{tpu_custom_call.1} parent=79 // pred_region
          %611 = dma.done [#allocation9], 256
        $region92: #{tpu_custom_call.1} parent=79 // pred_fallthru
          _
        // Predicated region
        $region93: #{tpu_custom_call.1} parent=79 // pred_check
          %p612 = pneg %p310
        $region94: #{tpu_custom_call.1} parent=79 // pred_check_branch
          %614 = sbr.rel (%p612) target = $region96
        $region95: #{tpu_custom_call.1} parent=79 // pred_region
          %615 = dma.done [#allocation12], 128
        $region96: #{tpu_custom_call.1} parent=79 // pred_fallthru
          _
        // Predicated region
        $region97: #{tpu_custom_call.1} parent=79 // pred_check
          %p616 = pneg %p331
        $region98: #{tpu_custom_call.1} parent=79 // pred_check_branch
          %618 = sbr.rel (%p616) target = $region100
        $region99: #{tpu_custom_call.1} parent=79 // pred_region
          %619 = dma.done [#allocation12], 128
        $region100: #{tpu_custom_call.1} parent=79 // pred_fallthru
          _
        // Predicated region
        $region101: #{tpu_custom_call.1} parent=79 // pred_check
          %p620 = pneg %p352
        $region102: #{tpu_custom_call.1} parent=79 // pred_check_branch
          %622 = sbr.rel (%p620) target = $region104
        $region103: #{tpu_custom_call.1} parent=79 // pred_region
          %623 = dma.done [#allocation15], 128
        $region104: #{tpu_custom_call.1} parent=79 // pred_fallthru
          _
        %p624 = scmp.lt.s32.totalorder %s43, 1
        %s625 = scalar_select %p624, %s43, 1
        %s626 = smul.addr %s625, 2
        %s627 = smul.addr %s626, 4
        %s628 = scalar_lea.vmem %s0, %s627
        %p629 = pneg %p64
        %p630 = pneg %p61
        %s631 = sand.u32 %s77, 1
        %s632 = scalar_lea.sflag [#allocation6], %s631
        %s633 = sand.u32 %s77, 1
        %s634 = smul.addr %s633, 128
        %s635 = scalar_lea.vmem [#allocation5], %s634
        %p636 = pneg %p90
        %p637 = pneg %p87
        %p638 = scmp.lt.s32.totalorder %s43, 1
        %s639 = scalar_select %p638, %s43, 1
        %s640 = smul.addr %s639, 2
        %s641 = smul.addr %s640, 4
        %s642 = scalar_lea.vmem %s2, %s641
        %p643 = pneg %p116
        %p644 = pneg %p113
        %p645 = scmp.lt.s32.totalorder %s43, 1
        %s646 = scalar_select %p645, %s43, 1
        %s647 = smul.addr %s646, 2
        %s648 = smul.addr %s647, 4
        %s649 = scalar_lea.vmem %s3, %s648
        %p650 = pneg %p142
        %p651 = pneg %p139
        %p652 = pneg %p163
        %p653 = pneg %p160
        %p654 = pneg %p184
        %p655 = pneg %p181
        %p656 = pneg %p205
        %p657 = pneg %p202
        %p658 = pneg %p226
        %p659 = pneg %p223
        %p660 = pneg %p247
        %p661 = pneg %p244
        %p662 = pneg %p268
        %p663 = pneg %p265
        %p664 = pneg %p289
        %p665 = pneg %p286
        %p666 = pneg %p310
        %p667 = pneg %p307
        %p668 = pneg %p331
        %p669 = pneg %p328
        %p670 = pneg %p352
        %p671 = pneg %p349
        %p672 = pneg %p373
        %p673 = pneg %p370
        %p674 = pneg %p399
        %p675 = pneg %p396
        %s676 = sand.u32 %s386, 1
        %s677 = scalar_lea.sflag [#allocation7], %s676
        %s678 = sand.u32 %s386, 1
        %s679 = smul.addr %s678, 32
        %s680 = scalar_lea.vmem [#allocation16], %s679
        %p681 = pneg %p425
        %p682 = pneg %p422
        %s683 = sand.u32 %s43, 1
        %s684 = scalar_lea.sflag [#allocation18], %s683
        %s685 = sand.u32 %s412, 1
        %s686 = smul.addr %s685, 8
        %s687 = scalar_lea.vmem [#allocation17], %s686
        %p688 = pneg %p451
        %p689 = pneg %p448
        %s690 = sand.u32 %s43, 1
        %s691 = scalar_lea.sflag [#allocation18], %s690
        %s692 = sand.u32 %s438, 1
        %s693 = smul.addr %s692, 8
        %s694 = scalar_lea.vmem [#allocation19], %s693
        %p695 = scmp.lt.s32.totalorder %s43, 1
        %s696 = scalar_select %p695, %s43, 1
        %s697 = smul.addr %s696, 2
        %s698 = smul.addr %s697, 4
        %s699 = scalar_lea.vmem %s0, %s698
        %p700 = scmp.lt.s32.totalorder %s43, 1
        %s701 = scalar_select %p700, %s43, 1
        %s702 = smul.addr %s701, 2
        %s703 = smul.addr %s702, 4
        %s704 = scalar_lea.vmem %s2, %s703
        %p705 = scmp.lt.s32.totalorder %s43, 1
        %s706 = scalar_select %p705, %s43, 1
        %s707 = smul.addr %s706, 2
        %s708 = smul.addr %s707, 4
        %s709 = scalar_lea.vmem %s3, %s708
        %v711 = vld [vmem:[%s699] sm:$0xff]
        %v712 = vld [vmem:[%s704] sm:$0xff]
        %v713 = vld [vmem:[%s709] sm:$0xff]
        %v714 = vld [vmem:[%s599] sm:$0xff]
        %v715 = vld [vmem:[%s599 + $0x8] sm:$0xff]
        %v716 = vld [vmem:[%s599 + $0x10] sm:$0xff]
        %v717 = vld [vmem:[%s599 + $0x18] sm:$0xff]
        %v718 = vld [vmem:[%s599 + $0x20] sm:$0xff]
        %v719 = vld [vmem:[%s599 + $0x28] sm:$0xff]
        %v720 = vld [vmem:[%s599 + $0x30] sm:$0xff]
        %v721 = vld [vmem:[%s599 + $0x38] sm:$0xff]
        %v722 = vld [vmem:[%s599 + $0x40] sm:$0xff]
        %v723 = vld [vmem:[%s599 + $0x48] sm:$0xff]
        %v724 = vld [vmem:[%s599 + $0x50] sm:$0xff]
        %v725 = vld [vmem:[%s599 + $0x58] sm:$0xff]
        %v726 = vld [vmem:[%s599 + $0x60] sm:$0xff]
        %v727 = vld [vmem:[%s599 + $0x68] sm:$0xff]
        %v728 = vld [vmem:[%s599 + $0x70] sm:$0xff]
        %v729 = vld [vmem:[%s599 + $0x78] sm:$0xff]
        %v730 = vld [vmem:[%s4] sm:$0xff]
        %v731 = vld [vmem:[#allocation8] sm:$0xff]
        %vm732 = vcmask 64512
        %v734 = vsel %vm732, %v731, 0
        %736 = vmatprep.subr.mxu0 0.0
        %737 = vmatpush1.msra.mxu0 0.0
        %738 = vmatprep.subr.mxu0 0.0
        %739 = vmatpush1.msra.mxu0 0.0
        %740 = vmatprep.subr.mxu0 0.0
        %741 = vmatpush1.msra.mxu0 0.0
        %742 = vmatprep.subr.mxu0 0.0
        %743 = vmatpush1.msra.mxu0 0.0
        %744 = vmatprep.subr.mxu0 0.0
        %745 = vmatpush1.msra.mxu0 0.0
        %746 = vmatprep.subr.mxu0 0.0
        %747 = vmatpush1.msra.mxu0 0.0
        %748 = vmatprep.subr.mxu0 0.0
        %749 = vmatpush1.msra.mxu0 0.0
        %750 = vmatprep.subr.mxu0 0.0
        %751 = vmatpush1.msra.mxu0 0.0
        %752 = vmatprep.subr.mxu0 0.0
        %753 = vmatpush1.msra.mxu0 0.0
        %754 = vmatprep.subr.mxu0 0.0
        %755 = vmatpush1.msra.mxu0 0.0
        %756 = vmatprep.subr.mxu0 0.0
        %757 = vmatpush1.msra.mxu0 0.0
        %758 = vmatprep.subr.mxu0 0.0
        %759 = vmatpush1.msra.mxu0 0.0
        %760 = vmatprep.subr.mxu0 0.0
        %761 = vmatpush1.msra.mxu0 0.0
        %762 = vmatprep.subr.mxu0 0.0
        %763 = vmatpush1.msra.mxu0 0.0
        %764 = vmatprep.subr.mxu0 0.0
        %765 = vmatpush1.msra.mxu0 0.0
        %766 = vmatprep.subr.mxu0 %v715
        %767 = vmatpush1.msra.mxu0 %v714
        %768 = vmatprep.subr.mxu0 0.0
        %769 = vmatpush2.msra.mxu0 0.0
        %770 = vmatprep.subr.mxu0 0.0
        %771 = vmatpush2.msra.mxu0 0.0
        %772 = vmatprep.subr.mxu0 0.0
        %773 = vmatpush2.msra.mxu0 0.0
        %774 = vmatprep.subr.mxu0 0.0
        %775 = vmatpush2.msra.mxu0 0.0
        %776 = vmatprep.subr.mxu0 0.0
        %777 = vmatpush2.msra.mxu0 0.0
        %778 = vmatprep.subr.mxu0 0.0
        %779 = vmatpush2.msra.mxu0 0.0
        %780 = vmatprep.subr.mxu0 0.0
        %781 = vmatpush2.msra.mxu0 0.0
        %782 = vmatprep.subr.mxu0 0.0
        %783 = vmatpush2.msra.mxu0 0.0
        %784 = vmatprep.subr.mxu0 0.0
        %785 = vmatpush2.msra.mxu0 0.0
        %786 = vmatprep.subr.mxu0 0.0
        %787 = vmatpush2.msra.mxu0 0.0
        %788 = vmatprep.subr.mxu0 0.0
        %789 = vmatpush2.msra.mxu0 0.0
        %790 = vmatprep.subr.mxu0 0.0
        %791 = vmatpush2.msra.mxu0 0.0
        %792 = vmatprep.subr.mxu0 0.0
        %793 = vmatpush2.msra.mxu0 0.0
        %794 = vmatprep.subr.mxu0 0.0
        %795 = vmatpush2.msra.mxu0 0.0
        %796 = vmatprep.subr.mxu0 0.0
        %797 = vmatpush2.msra.mxu0 0.0
        %798 = vmatprep.subr.mxu0 0.0
        %799 = vmatpush2.msra.mxu0 0.0
        %800 = vmatprep.mubr.f32.mxu0 0.0
        %801 = vmatmul.mubr.f32.gmra.mxu0 %v734
        %v802 = vpop.f32.mrf.mxu0
        %v803 = vadd.f32 0.0, %v802
        %v804 = vpop.f32.mrf.mxu0
        %v805 = vadd.f32 0.0, %v804
        %806 = vdwg.mxu0
        %807 = vmatprep.subr.mxu0 0.0
        %808 = vmatpush1.msra.mxu0 0.0
        %809 = vmatprep.subr.mxu0 0.0
        %810 = vmatpush1.msra.mxu0 0.0
        %811 = vmatprep.subr.mxu0 0.0
        %812 = vmatpush1.msra.mxu0 0.0
        %813 = vmatprep.subr.mxu0 0.0
        %814 = vmatpush1.msra.mxu0 0.0
        %815 = vmatprep.subr.mxu0 0.0
        %816 = vmatpush1.msra.mxu0 0.0
        %817 = vmatprep.subr.mxu0 0.0
        %818 = vmatpush1.msra.mxu0 0.0
        %819 = vmatprep.subr.mxu0 0.0
        %820 = vmatpush1.msra.mxu0 0.0
        %821 = vmatprep.subr.mxu0 0.0
        %822 = vmatpush1.msra.mxu0 0.0
        %823 = vmatprep.subr.mxu0 0.0
        %824 = vmatpush1.msra.mxu0 0.0
        %825 = vmatprep.subr.mxu0 0.0
        %826 = vmatpush1.msra.mxu0 0.0
        %827 = vmatprep.subr.mxu0 0.0
        %828 = vmatpush1.msra.mxu0 0.0
        %829 = vmatprep.subr.mxu0 0.0
        %830 = vmatpush1.msra.mxu0 0.0
        %831 = vmatprep.subr.mxu0 0.0
        %832 = vmatpush1.msra.mxu0 0.0
        %833 = vmatprep.subr.mxu0 0.0
        %834 = vmatpush1.msra.mxu0 0.0
        %835 = vmatprep.subr.mxu0 0.0
        %836 = vmatpush1.msra.mxu0 0.0
        %837 = vmatprep.subr.mxu0 %v717
        %838 = vmatpush1.msra.mxu0 %v716
        %839 = vmatprep.subr.mxu0 0.0
        %840 = vmatpush2.msra.mxu0 0.0
        %841 = vmatprep.subr.mxu0 0.0
        %842 = vmatpush2.msra.mxu0 0.0
        %843 = vmatprep.subr.mxu0 0.0
        %844 = vmatpush2.msra.mxu0 0.0
        %845 = vmatprep.subr.mxu0 0.0
        %846 = vmatpush2.msra.mxu0 0.0
        %847 = vmatprep.subr.mxu0 0.0
        %848 = vmatpush2.msra.mxu0 0.0
        %849 = vmatprep.subr.mxu0 0.0
        %850 = vmatpush2.msra.mxu0 0.0
        %851 = vmatprep.subr.mxu0 0.0
        %852 = vmatpush2.msra.mxu0 0.0
        %853 = vmatprep.subr.mxu0 0.0
        %854 = vmatpush2.msra.mxu0 0.0
        %855 = vmatprep.subr.mxu0 0.0
        %856 = vmatpush2.msra.mxu0 0.0
        %857 = vmatprep.subr.mxu0 0.0
        %858 = vmatpush2.msra.mxu0 0.0
        %859 = vmatprep.subr.mxu0 0.0
        %860 = vmatpush2.msra.mxu0 0.0
        %861 = vmatprep.subr.mxu0 0.0
        %862 = vmatpush2.msra.mxu0 0.0
        %863 = vmatprep.subr.mxu0 0.0
        %864 = vmatpush2.msra.mxu0 0.0
        %865 = vmatprep.subr.mxu0 0.0
        %866 = vmatpush2.msra.mxu0 0.0
        %867 = vmatprep.subr.mxu0 0.0
        %868 = vmatpush2.msra.mxu0 0.0
        %869 = vmatprep.subr.mxu0 0.0
        %870 = vmatpush2.msra.mxu0 0.0
        %871 = vmatprep.mubr.f32.mxu0 0.0
        %872 = vmatmul.mubr.f32.gmra.mxu0 %v734
        %v873 = vpop.f32.mrf.mxu0
        %v874 = vadd.f32 0.0, %v873
        %v875 = vpop.f32.mrf.mxu0
        %v876 = vadd.f32 0.0, %v875
        %877 = vdwg.mxu0
        %878 = vmatprep.subr.mxu0 0.0
        %879 = vmatpush1.msra.mxu0 0.0
        %880 = vmatprep.subr.mxu0 0.0
        %881 = vmatpush1.msra.mxu0 0.0
        %882 = vmatprep.subr.mxu0 0.0
        %883 = vmatpush1.msra.mxu0 0.0
        %884 = vmatprep.subr.mxu0 0.0
        %885 = vmatpush1.msra.mxu0 0.0
        %886 = vmatprep.subr.mxu0 0.0
        %887 = vmatpush1.msra.mxu0 0.0
        %888 = vmatprep.subr.mxu0 0.0
        %889 = vmatpush1.msra.mxu0 0.0
        %890 = vmatprep.subr.mxu0 0.0
        %891 = vmatpush1.msra.mxu0 0.0
        %892 = vmatprep.subr.mxu0 0.0
        %893 = vmatpush1.msra.mxu0 0.0
        %894 = vmatprep.subr.mxu0 0.0
        %895 = vmatpush1.msra.mxu0 0.0
        %896 = vmatprep.subr.mxu0 0.0
        %897 = vmatpush1.msra.mxu0 0.0
        %898 = vmatprep.subr.mxu0 0.0
        %899 = vmatpush1.msra.mxu0 0.0
        %900 = vmatprep.subr.mxu0 0.0
        %901 = vmatpush1.msra.mxu0 0.0
        %902 = vmatprep.subr.mxu0 0.0
        %903 = vmatpush1.msra.mxu0 0.0
        %904 = vmatprep.subr.mxu0 0.0
        %905 = vmatpush1.msra.mxu0 0.0
        %906 = vmatprep.subr.mxu0 0.0
        %907 = vmatpush1.msra.mxu0 0.0
        %908 = vmatprep.subr.mxu0 %v719
        %909 = vmatpush1.msra.mxu0 %v718
        %910 = vmatprep.subr.mxu0 0.0
        %911 = vmatpush2.msra.mxu0 0.0
        %912 = vmatprep.subr.mxu0 0.0
        %913 = vmatpush2.msra.mxu0 0.0
        %914 = vmatprep.subr.mxu0 0.0
        %915 = vmatpush2.msra.mxu0 0.0
        %916 = vmatprep.subr.mxu0 0.0
        %917 = vmatpush2.msra.mxu0 0.0
        %918 = vmatprep.subr.mxu0 0.0
        %919 = vmatpush2.msra.mxu0 0.0
        %920 = vmatprep.subr.mxu0 0.0
        %921 = vmatpush2.msra.mxu0 0.0
        %922 = vmatprep.subr.mxu0 0.0
        %923 = vmatpush2.msra.mxu0 0.0
        %924 = vmatprep.subr.mxu0 0.0
        %925 = vmatpush2.msra.mxu0 0.0
        %926 = vmatprep.subr.mxu0 0.0
        %927 = vmatpush2.msra.mxu0 0.0
        %928 = vmatprep.subr.mxu0 0.0
        %929 = vmatpush2.msra.mxu0 0.0
        %930 = vmatprep.subr.mxu0 0.0
        %931 = vmatpush2.msra.mxu0 0.0
        %932 = vmatprep.subr.mxu0 0.0
        %933 = vmatpush2.msra.mxu0 0.0
        %934 = vmatprep.subr.mxu0 0.0
        %935 = vmatpush2.msra.mxu0 0.0
        %936 = vmatprep.subr.mxu0 0.0
        %937 = vmatpush2.msra.mxu0 0.0
        %938 = vmatprep.subr.mxu0 0.0
        %939 = vmatpush2.msra.mxu0 0.0
        %940 = vmatprep.subr.mxu0 0.0
        %941 = vmatpush2.msra.mxu0 0.0
        %942 = vmatprep.mubr.f32.mxu0 0.0
        %943 = vmatmul.mubr.f32.gmra.mxu0 %v734
        %v944 = vpop.f32.mrf.mxu0
        %v945 = vadd.f32 0.0, %v944
        %v946 = vpop.f32.mrf.mxu0
        %v947 = vadd.f32 0.0, %v946
        %948 = vdwg.mxu0
        %949 = vmatprep.subr.mxu0 0.0
        %950 = vmatpush1.msra.mxu0 0.0
        %951 = vmatprep.subr.mxu0 0.0
        %952 = vmatpush1.msra.mxu0 0.0
        %953 = vmatprep.subr.mxu0 0.0
        %954 = vmatpush1.msra.mxu0 0.0
        %955 = vmatprep.subr.mxu0 0.0
        %956 = vmatpush1.msra.mxu0 0.0
        %957 = vmatprep.subr.mxu0 0.0
        %958 = vmatpush1.msra.mxu0 0.0
        %959 = vmatprep.subr.mxu0 0.0
        %960 = vmatpush1.msra.mxu0 0.0
        %961 = vmatprep.subr.mxu0 0.0
        %962 = vmatpush1.msra.mxu0 0.0
        %963 = vmatprep.subr.mxu0 0.0
        %964 = vmatpush1.msra.mxu0 0.0
        %965 = vmatprep.subr.mxu0 0.0
        %966 = vmatpush1.msra.mxu0 0.0
        %967 = vmatprep.subr.mxu0 0.0
        %968 = vmatpush1.msra.mxu0 0.0
        %969 = vmatprep.subr.mxu0 0.0
        %970 = vmatpush1.msra.mxu0 0.0
        %971 = vmatprep.subr.mxu0 0.0
        %972 = vmatpush1.msra.mxu0 0.0
        %973 = vmatprep.subr.mxu0 0.0
        %974 = vmatpush1.msra.mxu0 0.0
        %975 = vmatprep.subr.mxu0 0.0
        %976 = vmatpush1.msra.mxu0 0.0
        %977 = vmatprep.subr.mxu0 0.0
        %978 = vmatpush1.msra.mxu0 0.0
        %979 = vmatprep.subr.mxu0 %v721
        %980 = vmatpush1.msra.mxu0 %v720
        %981 = vmatprep.subr.mxu0 0.0
        %982 = vmatpush2.msra.mxu0 0.0
        %983 = vmatprep.subr.mxu0 0.0
        %984 = vmatpush2.msra.mxu0 0.0
        %985 = vmatprep.subr.mxu0 0.0
        %986 = vmatpush2.msra.mxu0 0.0
        %987 = vmatprep.subr.mxu0 0.0
        %988 = vmatpush2.msra.mxu0 0.0
        %989 = vmatprep.subr.mxu0 0.0
        %990 = vmatpush2.msra.mxu0 0.0
        %991 = vmatprep.subr.mxu0 0.0
        %992 = vmatpush2.msra.mxu0 0.0
        %993 = vmatprep.subr.mxu0 0.0
        %994 = vmatpush2.msra.mxu0 0.0
        %995 = vmatprep.subr.mxu0 0.0
        %996 = vmatpush2.msra.mxu0 0.0
        %997 = vmatprep.subr.mxu0 0.0
        %998 = vmatpush2.msra.mxu0 0.0
        %999 = vmatprep.subr.mxu0 0.0
        %1000 = vmatpush2.msra.mxu0 0.0
        %1001 = vmatprep.subr.mxu0 0.0
        %1002 = vmatpush2.msra.mxu0 0.0
        %1003 = vmatprep.subr.mxu0 0.0
        %1004 = vmatpush2.msra.mxu0 0.0
        %1005 = vmatprep.subr.mxu0 0.0
        %1006 = vmatpush2.msra.mxu0 0.0
        %1007 = vmatprep.subr.mxu0 0.0
        %1008 = vmatpush2.msra.mxu0 0.0
        %1009 = vmatprep.subr.mxu0 0.0
        %1010 = vmatpush2.msra.mxu0 0.0
        %1011 = vmatprep.subr.mxu0 0.0
        %1012 = vmatpush2.msra.mxu0 0.0
        %1013 = vmatprep.mubr.f32.mxu0 0.0
        %1014 = vmatmul.mubr.f32.gmra.mxu0 %v734
        %v1015 = vpop.f32.mrf.mxu0
        %v1016 = vadd.f32 0.0, %v1015
        %v1017 = vpop.f32.mrf.mxu0
        %v1018 = vadd.f32 0.0, %v1017
        %1019 = vdwg.mxu0
        %1020 = vmatprep.subr.mxu0 0.0
        %1021 = vmatpush1.msra.mxu0 0.0
        %1022 = vmatprep.subr.mxu0 0.0
        %1023 = vmatpush1.msra.mxu0 0.0
        %1024 = vmatprep.subr.mxu0 0.0
        %1025 = vmatpush1.msra.mxu0 0.0
        %1026 = vmatprep.subr.mxu0 0.0
        %1027 = vmatpush1.msra.mxu0 0.0
        %1028 = vmatprep.subr.mxu0 0.0
        %1029 = vmatpush1.msra.mxu0 0.0
        %1030 = vmatprep.subr.mxu0 0.0
        %1031 = vmatpush1.msra.mxu0 0.0
        %1032 = vmatprep.subr.mxu0 0.0
        %1033 = vmatpush1.msra.mxu0 0.0
        %1034 = vmatprep.subr.mxu0 0.0
        %1035 = vmatpush1.msra.mxu0 0.0
        %1036 = vmatprep.subr.mxu0 0.0
        %1037 = vmatpush1.msra.mxu0 0.0
        %1038 = vmatprep.subr.mxu0 0.0
        %1039 = vmatpush1.msra.mxu0 0.0
        %1040 = vmatprep.subr.mxu0 0.0
        %1041 = vmatpush1.msra.mxu0 0.0
        %1042 = vmatprep.subr.mxu0 0.0
        %1043 = vmatpush1.msra.mxu0 0.0
        %1044 = vmatprep.subr.mxu0 0.0
        %1045 = vmatpush1.msra.mxu0 0.0
        %1046 = vmatprep.subr.mxu0 0.0
        %1047 = vmatpush1.msra.mxu0 0.0
        %1048 = vmatprep.subr.mxu0 0.0
        %1049 = vmatpush1.msra.mxu0 0.0
        %1050 = vmatprep.subr.mxu0 %v723
        %1051 = vmatpush1.msra.mxu0 %v722
        %1052 = vmatprep.subr.mxu0 0.0
        %1053 = vmatpush2.msra.mxu0 0.0
        %1054 = vmatprep.subr.mxu0 0.0
        %1055 = vmatpush2.msra.mxu0 0.0
        %1056 = vmatprep.subr.mxu0 0.0
        %1057 = vmatpush2.msra.mxu0 0.0
        %1058 = vmatprep.subr.mxu0 0.0
        %1059 = vmatpush2.msra.mxu0 0.0
        %1060 = vmatprep.subr.mxu0 0.0
        %1061 = vmatpush2.msra.mxu0 0.0
        %1062 = vmatprep.subr.mxu0 0.0
        %1063 = vmatpush2.msra.mxu0 0.0
        %1064 = vmatprep.subr.mxu0 0.0
        %1065 = vmatpush2.msra.mxu0 0.0
        %1066 = vmatprep.subr.mxu0 0.0
        %1067 = vmatpush2.msra.mxu0 0.0
        %1068 = vmatprep.subr.mxu0 0.0
        %1069 = vmatpush2.msra.mxu0 0.0
        %1070 = vmatprep.subr.mxu0 0.0
        %1071 = vmatpush2.msra.mxu0 0.0
        %1072 = vmatprep.subr.mxu0 0.0
        %1073 = vmatpush2.msra.mxu0 0.0
        %1074 = vmatprep.subr.mxu0 0.0
        %1075 = vmatpush2.msra.mxu0 0.0
        %1076 = vmatprep.subr.mxu0 0.0
        %1077 = vmatpush2.msra.mxu0 0.0
        %1078 = vmatprep.subr.mxu0 0.0
        %1079 = vmatpush2.msra.mxu0 0.0
        %1080 = vmatprep.subr.mxu0 0.0
        %1081 = vmatpush2.msra.mxu0 0.0
        %1082 = vmatprep.subr.mxu0 0.0
        %1083 = vmatpush2.msra.mxu0 0.0
        %1084 = vmatprep.mubr.f32.mxu0 0.0
        %1085 = vmatmul.mubr.f32.gmra.mxu0 %v734
        %v1086 = vpop.f32.mrf.mxu0
        %v1087 = vadd.f32 0.0, %v1086
        %v1088 = vpop.f32.mrf.mxu0
        %v1089 = vadd.f32 0.0, %v1088
        %1090 = vdwg.mxu0
        %1091 = vmatprep.subr.mxu0 0.0
        %1092 = vmatpush1.msra.mxu0 0.0
        %1093 = vmatprep.subr.mxu0 0.0
        %1094 = vmatpush1.msra.mxu0 0.0
        %1095 = vmatprep.subr.mxu0 0.0
        %1096 = vmatpush1.msra.mxu0 0.0
        %1097 = vmatprep.subr.mxu0 0.0
        %1098 = vmatpush1.msra.mxu0 0.0
        %1099 = vmatprep.subr.mxu0 0.0
        %1100 = vmatpush1.msra.mxu0 0.0
        %1101 = vmatprep.subr.mxu0 0.0
        %1102 = vmatpush1.msra.mxu0 0.0
        %1103 = vmatprep.subr.mxu0 0.0
        %1104 = vmatpush1.msra.mxu0 0.0
        %1105 = vmatprep.subr.mxu0 0.0
        %1106 = vmatpush1.msra.mxu0 0.0
        %1107 = vmatprep.subr.mxu0 0.0
        %1108 = vmatpush1.msra.mxu0 0.0
        %1109 = vmatprep.subr.mxu0 0.0
        %1110 = vmatpush1.msra.mxu0 0.0
        %1111 = vmatprep.subr.mxu0 0.0
        %1112 = vmatpush1.msra.mxu0 0.0
        %1113 = vmatprep.subr.mxu0 0.0
        %1114 = vmatpush1.msra.mxu0 0.0
        %1115 = vmatprep.subr.mxu0 0.0
        %1116 = vmatpush1.msra.mxu0 0.0
        %1117 = vmatprep.subr.mxu0 0.0
        %1118 = vmatpush1.msra.mxu0 0.0
        %1119 = vmatprep.subr.mxu0 0.0
        %1120 = vmatpush1.msra.mxu0 0.0
        %1121 = vmatprep.subr.mxu0 %v725
        %1122 = vmatpush1.msra.mxu0 %v724
        %1123 = vmatprep.subr.mxu0 0.0
        %1124 = vmatpush2.msra.mxu0 0.0
        %1125 = vmatprep.subr.mxu0 0.0
        %1126 = vmatpush2.msra.mxu0 0.0
        %1127 = vmatprep.subr.mxu0 0.0
        %1128 = vmatpush2.msra.mxu0 0.0
        %1129 = vmatprep.subr.mxu0 0.0
        %1130 = vmatpush2.msra.mxu0 0.0
        %1131 = vmatprep.subr.mxu0 0.0
        %1132 = vmatpush2.msra.mxu0 0.0
        %1133 = vmatprep.subr.mxu0 0.0
        %1134 = vmatpush2.msra.mxu0 0.0
        %1135 = vmatprep.subr.mxu0 0.0
        %1136 = vmatpush2.msra.mxu0 0.0
        %1137 = vmatprep.subr.mxu0 0.0
        %1138 = vmatpush2.msra.mxu0 0.0
        %1139 = vmatprep.subr.mxu0 0.0
        %1140 = vmatpush2.msra.mxu0 0.0
        %1141 = vmatprep.subr.mxu0 0.0
        %1142 = vmatpush2.msra.mxu0 0.0
        %1143 = vmatprep.subr.mxu0 0.0
        %1144 = vmatpush2.msra.mxu0 0.0
        %1145 = vmatprep.subr.mxu0 0.0
        %1146 = vmatpush2.msra.mxu0 0.0
        %1147 = vmatprep.subr.mxu0 0.0
        %1148 = vmatpush2.msra.mxu0 0.0
        %1149 = vmatprep.subr.mxu0 0.0
        %1150 = vmatpush2.msra.mxu0 0.0
        %1151 = vmatprep.subr.mxu0 0.0
        %1152 = vmatpush2.msra.mxu0 0.0
        %1153 = vmatprep.subr.mxu0 0.0
        %1154 = vmatpush2.msra.mxu0 0.0
        %1155 = vmatprep.mubr.f32.mxu0 0.0
        %1156 = vmatmul.mubr.f32.gmra.mxu0 %v734
        %v1157 = vpop.f32.mrf.mxu0
        %v1158 = vadd.f32 0.0, %v1157
        %v1159 = vpop.f32.mrf.mxu0
        %v1160 = vadd.f32 0.0, %v1159
        %1161 = vdwg.mxu0
        %1162 = vmatprep.subr.mxu0 0.0
        %1163 = vmatpush1.msra.mxu0 0.0
        %1164 = vmatprep.subr.mxu0 0.0
        %1165 = vmatpush1.msra.mxu0 0.0
        %1166 = vmatprep.subr.mxu0 0.0
        %1167 = vmatpush1.msra.mxu0 0.0
        %1168 = vmatprep.subr.mxu0 0.0
        %1169 = vmatpush1.msra.mxu0 0.0
        %1170 = vmatprep.subr.mxu0 0.0
        %1171 = vmatpush1.msra.mxu0 0.0
        %1172 = vmatprep.subr.mxu0 0.0
        %1173 = vmatpush1.msra.mxu0 0.0
        %1174 = vmatprep.subr.mxu0 0.0
        %1175 = vmatpush1.msra.mxu0 0.0
        %1176 = vmatprep.subr.mxu0 0.0
        %1177 = vmatpush1.msra.mxu0 0.0
        %1178 = vmatprep.subr.mxu0 0.0
        %1179 = vmatpush1.msra.mxu0 0.0
        %1180 = vmatprep.subr.mxu0 0.0
        %1181 = vmatpush1.msra.mxu0 0.0
        %1182 = vmatprep.subr.mxu0 0.0
        %1183 = vmatpush1.msra.mxu0 0.0
        %1184 = vmatprep.subr.mxu0 0.0
        %1185 = vmatpush1.msra.mxu0 0.0
        %1186 = vmatprep.subr.mxu0 0.0
        %1187 = vmatpush1.msra.mxu0 0.0
        %1188 = vmatprep.subr.mxu0 0.0
        %1189 = vmatpush1.msra.mxu0 0.0
        %1190 = vmatprep.subr.mxu0 0.0
        %1191 = vmatpush1.msra.mxu0 0.0
        %1192 = vmatprep.subr.mxu0 %v727
        %1193 = vmatpush1.msra.mxu0 %v726
        %1194 = vmatprep.subr.mxu0 0.0
        %1195 = vmatpush2.msra.mxu0 0.0
        %1196 = vmatprep.subr.mxu0 0.0
        %1197 = vmatpush2.msra.mxu0 0.0
        %1198 = vmatprep.subr.mxu0 0.0
        %1199 = vmatpush2.msra.mxu0 0.0
        %1200 = vmatprep.subr.mxu0 0.0
        %1201 = vmatpush2.msra.mxu0 0.0
        %1202 = vmatprep.subr.mxu0 0.0
        %1203 = vmatpush2.msra.mxu0 0.0
        %1204 = vmatprep.subr.mxu0 0.0
        %1205 = vmatpush2.msra.mxu0 0.0
        %1206 = vmatprep.subr.mxu0 0.0
        %1207 = vmatpush2.msra.mxu0 0.0
        %1208 = vmatprep.subr.mxu0 0.0
        %1209 = vmatpush2.msra.mxu0 0.0
        %1210 = vmatprep.subr.mxu0 0.0
        %1211 = vmatpush2.msra.mxu0 0.0
        %1212 = vmatprep.subr.mxu0 0.0
        %1213 = vmatpush2.msra.mxu0 0.0
        %1214 = vmatprep.subr.mxu0 0.0
        %1215 = vmatpush2.msra.mxu0 0.0
        %1216 = vmatprep.subr.mxu0 0.0
        %1217 = vmatpush2.msra.mxu0 0.0
        %1218 = vmatprep.subr.mxu0 0.0
        %1219 = vmatpush2.msra.mxu0 0.0
        %1220 = vmatprep.subr.mxu0 0.0
        %1221 = vmatpush2.msra.mxu0 0.0
        %1222 = vmatprep.subr.mxu0 0.0
        %1223 = vmatpush2.msra.mxu0 0.0
        %1224 = vmatprep.subr.mxu0 0.0
        %1225 = vmatpush2.msra.mxu0 0.0
        %1226 = vmatprep.mubr.f32.mxu0 0.0
        %1227 = vmatmul.mubr.f32.gmra.mxu0 %v734
        %v1228 = vpop.f32.mrf.mxu0
        %v1229 = vadd.f32 0.0, %v1228
        %v1230 = vpop.f32.mrf.mxu0
        %v1231 = vadd.f32 0.0, %v1230
        %1232 = vdwg.mxu0
        %1233 = vmatprep.subr.mxu0 0.0
        %1234 = vmatpush1.msra.mxu0 0.0
        %1235 = vmatprep.subr.mxu0 0.0
        %1236 = vmatpush1.msra.mxu0 0.0
        %1237 = vmatprep.subr.mxu0 0.0
        %1238 = vmatpush1.msra.mxu0 0.0
        %1239 = vmatprep.subr.mxu0 0.0
        %1240 = vmatpush1.msra.mxu0 0.0
        %1241 = vmatprep.subr.mxu0 0.0
        %1242 = vmatpush1.msra.mxu0 0.0
        %1243 = vmatprep.subr.mxu0 0.0
        %1244 = vmatpush1.msra.mxu0 0.0
        %1245 = vmatprep.subr.mxu0 0.0
        %1246 = vmatpush1.msra.mxu0 0.0
        %1247 = vmatprep.subr.mxu0 0.0
        %1248 = vmatpush1.msra.mxu0 0.0
        %1249 = vmatprep.subr.mxu0 0.0
        %1250 = vmatpush1.msra.mxu0 0.0
        %1251 = vmatprep.subr.mxu0 0.0
        %1252 = vmatpush1.msra.mxu0 0.0
        %1253 = vmatprep.subr.mxu0 0.0
        %1254 = vmatpush1.msra.mxu0 0.0
        %1255 = vmatprep.subr.mxu0 0.0
        %1256 = vmatpush1.msra.mxu0 0.0
        %1257 = vmatprep.subr.mxu0 0.0
        %1258 = vmatpush1.msra.mxu0 0.0
        %1259 = vmatprep.subr.mxu0 0.0
        %1260 = vmatpush1.msra.mxu0 0.0
        %1261 = vmatprep.subr.mxu0 0.0
        %1262 = vmatpush1.msra.mxu0 0.0
        %1263 = vmatprep.subr.mxu0 %v729
        %1264 = vmatpush1.msra.mxu0 %v728
        %1265 = vmatprep.subr.mxu0 0.0
        %1266 = vmatpush2.msra.mxu0 0.0
        %1267 = vmatprep.subr.mxu0 0.0
        %1268 = vmatpush2.msra.mxu0 0.0
        %1269 = vmatprep.subr.mxu0 0.0
        %1270 = vmatpush2.msra.mxu0 0.0
        %1271 = vmatprep.subr.mxu0 0.0
        %1272 = vmatpush2.msra.mxu0 0.0
        %1273 = vmatprep.subr.mxu0 0.0
        %1274 = vmatpush2.msra.mxu0 0.0
        %1275 = vmatprep.subr.mxu0 0.0
        %1276 = vmatpush2.msra.mxu0 0.0
        %1277 = vmatprep.subr.mxu0 0.0
        %1278 = vmatpush2.msra.mxu0 0.0
        %1279 = vmatprep.subr.mxu0 0.0
        %1280 = vmatpush2.msra.mxu0 0.0
        %1281 = vmatprep.subr.mxu0 0.0
        %1282 = vmatpush2.msra.mxu0 0.0
        %1283 = vmatprep.subr.mxu0 0.0
        %1284 = vmatpush2.msra.mxu0 0.0
        %1285 = vmatprep.subr.mxu0 0.0
        %1286 = vmatpush2.msra.mxu0 0.0
        %1287 = vmatprep.subr.mxu0 0.0
        %1288 = vmatpush2.msra.mxu0 0.0
        %1289 = vmatprep.subr.mxu0 0.0
        %1290 = vmatpush2.msra.mxu0 0.0
        %1291 = vmatprep.subr.mxu0 0.0
        %1292 = vmatpush2.msra.mxu0 0.0
        %1293 = vmatprep.subr.mxu0 0.0
        %1294 = vmatpush2.msra.mxu0 0.0
        %1295 = vmatprep.subr.mxu0 0.0
        %1296 = vmatpush2.msra.mxu0 0.0
        %1297 = vmatprep.mubr.f32.mxu0 0.0
        %1298 = vmatmul.mubr.f32.gmra.mxu0 %v734
        %v1299 = vpop.f32.mrf.mxu0
        %v1300 = vadd.f32 0.0, %v1299
        %v1301 = vpop.f32.mrf.mxu0
        %v1302 = vadd.f32 0.0, %v1301
        %1303 = vdwg.mxu0
        %v1304 = vld [vmem:[%s6] sm:$0xff]
        %1306 = vset.pattern.permute.xlu0 0
        %1307 = vperm.xlu0 %1306, %v1304
        %v1308 = vpop.permute.xlu0 %1307
        %v1311 = vcombine.high %v712, %v712
        %vm1312 = vcmask 31744
        %v1314 = vsel %vm1312, %v730, 0
        %vm1316 = vcmask 1043456
        %v1317 = vsel %vm1316, %v712, 0
        %v1319 = vsel %vm1316, %v1311, 0
        %1321 = vmatprep.subr.mxu0 0.0
        %1322 = vmatpush1.msra.mxu0 0.0
        %1323 = vmatprep.subr.mxu0 0.0
        %1324 = vmatpush1.msra.mxu0 0.0
        %1325 = vmatprep.subr.mxu0 0.0
        %1326 = vmatpush1.msra.mxu0 0.0
        %1327 = vmatprep.subr.mxu0 0.0
        %1328 = vmatpush1.msra.mxu0 0.0
        %1329 = vmatprep.subr.mxu0 0.0
        %1330 = vmatpush1.msra.mxu0 0.0
        %1331 = vmatprep.subr.mxu0 0.0
        %1332 = vmatpush1.msra.mxu0 0.0
        %1333 = vmatprep.subr.mxu0 0.0
        %1334 = vmatpush1.msra.mxu0 0.0
        %1335 = vmatprep.subr.mxu0 0.0
        %1336 = vmatpush1.msra.mxu0 0.0
        %1337 = vmatprep.subr.mxu0 0.0
        %1338 = vmatpush1.msra.mxu0 0.0
        %1339 = vmatprep.subr.mxu0 0.0
        %1340 = vmatpush1.msra.mxu0 0.0
        %1341 = vmatprep.subr.mxu0 0.0
        %1342 = vmatpush1.msra.mxu0 0.0
        %1343 = vmatprep.subr.mxu0 0.0
        %1344 = vmatpush1.msra.mxu0 0.0
        %1345 = vmatprep.subr.mxu0 0.0
        %1346 = vmatpush1.msra.mxu0 0.0
        %1347 = vmatprep.subr.mxu0 0.0
        %1348 = vmatpush1.msra.mxu0 0.0
        %1349 = vmatprep.subr.mxu0 0.0
        %1350 = vmatpush1.msra.mxu0 0.0
        %1351 = vmatprep.subr.mxu0 %v1319
        %1352 = vmatpush1.msra.mxu0 %v1317
        %1353 = vmatprep.subr.mxu0 0.0
        %1354 = vmatpush2.msra.mxu0 0.0
        %1355 = vmatprep.subr.mxu0 0.0
        %1356 = vmatpush2.msra.mxu0 0.0
        %1357 = vmatprep.subr.mxu0 0.0
        %1358 = vmatpush2.msra.mxu0 0.0
        %1359 = vmatprep.subr.mxu0 0.0
        %1360 = vmatpush2.msra.mxu0 0.0
        %1361 = vmatprep.subr.mxu0 0.0
        %1362 = vmatpush2.msra.mxu0 0.0
        %1363 = vmatprep.subr.mxu0 0.0
        %1364 = vmatpush2.msra.mxu0 0.0
        %1365 = vmatprep.subr.mxu0 0.0
        %1366 = vmatpush2.msra.mxu0 0.0
        %1367 = vmatprep.subr.mxu0 0.0
        %1368 = vmatpush2.msra.mxu0 0.0
        %1369 = vmatprep.subr.mxu0 0.0
        %1370 = vmatpush2.msra.mxu0 0.0
        %1371 = vmatprep.subr.mxu0 0.0
        %1372 = vmatpush2.msra.mxu0 0.0
        %1373 = vmatprep.subr.mxu0 0.0
        %1374 = vmatpush2.msra.mxu0 0.0
        %1375 = vmatprep.subr.mxu0 0.0
        %1376 = vmatpush2.msra.mxu0 0.0
        %1377 = vmatprep.subr.mxu0 0.0
        %1378 = vmatpush2.msra.mxu0 0.0
        %1379 = vmatprep.subr.mxu0 0.0
        %1380 = vmatpush2.msra.mxu0 0.0
        %1381 = vmatprep.subr.mxu0 0.0
        %1382 = vmatpush2.msra.mxu0 0.0
        %1383 = vmatprep.subr.mxu0 0.0
        %1384 = vmatpush2.msra.mxu0 0.0
        %1385 = vmatprep.mubr.f32.mxu0 0.0
        %1386 = vmatmul.mubr.f32.gmra.mxu0 %v1314
        %v1387 = vpop.f32.mrf.mxu0
        %v1388 = vadd.f32 %v1308, %v1387
        %v1389 = vpop.f32.mrf.mxu0
        %v1390 = vadd.f32 %v1308, %v1389
        %1391 = vdwg.mxu0
        %v1392 = vld [vmem:[%s7] sm:$0xff]
        %1394 = vset.pattern.permute.xlu0 0
        %1395 = vperm.xlu0 %1394, %v1392
        %v1396 = vpop.permute.xlu0 %1395
        %v1398 = vld [vmem:[#allocation4] sm:$0x1]
        %1400 = vset.pattern.permute.xlu0 0
        %1401 = vperm.xlu0 %1400, %v1398
        %v1402 = vpop.permute.xlu0 %1401
        %v1404 = vlaneseq
        %v1405 = vshrl.u32 %v1404, 7
        %v1406 = vsub.s32 0, %v1405
        %v1407 = vrot.slane %v1402, %v1406
        %v1408 = vadd.f32 %v803, %v1388
        %v1409 = vadd.f32 %v805, %v1390
        %v1410 = vtanh.pop %v1408
        %v1411 = vtanh.pop %v1409
        %v1412 = vmul.f32 %v1396, %v1410
        %v1413 = vmul.f32 %v1396, %v1411
        %v1414 = vrot.slane %v1412, 4
        %v1415 = vadd.f32 %v1412, %v1414
        %v1416 = vrot.slane %v1415, 2
        %v1417 = vadd.f32 %v1415, %v1416
        %v1418 = vrot.slane %v1417, 1
        %v1419 = vadd.f32 %v1417, %v1418
        %v1420 = vrot.slane %v1413, 4
        %v1421 = vadd.f32 %v1413, %v1420
        %v1422 = vrot.slane %v1421, 2
        %v1423 = vadd.f32 %v1421, %v1422
        %v1424 = vrot.slane %v1423, 1
        %v1425 = vadd.f32 %v1423, %v1424
        %v1426 = vadd.f32 %v1419, %v1407
        %v1427 = vadd.f32 %v1425, %v1407
        %v1428 = vadd.f32 %v874, %v1388
        %v1429 = vadd.f32 %v876, %v1390
        %v1430 = vtanh.pop %v1428
        %v1431 = vtanh.pop %v1429
        %v1432 = vmul.f32 %v1396, %v1430
        %v1433 = vmul.f32 %v1396, %v1431
        %v1434 = vrot.slane %v1432, 4
        %v1435 = vadd.f32 %v1432, %v1434
        %v1436 = vrot.slane %v1435, 2
        %v1437 = vadd.f32 %v1435, %v1436
        %v1438 = vrot.slane %v1437, 1
        %v1439 = vadd.f32 %v1437, %v1438
        %v1440 = vrot.slane %v1433, 4
        %v1441 = vadd.f32 %v1433, %v1440
        %v1442 = vrot.slane %v1441, 2
        %v1443 = vadd.f32 %v1441, %v1442
        %v1444 = vrot.slane %v1443, 1
        %v1445 = vadd.f32 %v1443, %v1444
        %v1446 = vadd.f32 %v1439, %v1407
        %v1447 = vadd.f32 %v1445, %v1407
        %v1448 = vadd.f32 %v945, %v1388
        %v1449 = vadd.f32 %v947, %v1390
        %v1450 = vtanh.pop %v1448
        %v1451 = vtanh.pop %v1449
        %v1452 = vmul.f32 %v1396, %v1450
        %v1453 = vmul.f32 %v1396, %v1451
        %v1454 = vrot.slane %v1452, 4
        %v1455 = vadd.f32 %v1452, %v1454
        %v1456 = vrot.slane %v1455, 2
        %v1457 = vadd.f32 %v1455, %v1456
        %v1458 = vrot.slane %v1457, 1
        %v1459 = vadd.f32 %v1457, %v1458
        %v1460 = vrot.slane %v1453, 4
        %v1461 = vadd.f32 %v1453, %v1460
        %v1462 = vrot.slane %v1461, 2
        %v1463 = vadd.f32 %v1461, %v1462
        %v1464 = vrot.slane %v1463, 1
        %v1465 = vadd.f32 %v1463, %v1464
        %v1466 = vadd.f32 %v1459, %v1407
        %v1467 = vadd.f32 %v1465, %v1407
        %v1468 = vadd.f32 %v1016, %v1388
        %v1469 = vadd.f32 %v1018, %v1390
        %v1470 = vtanh.pop %v1468
        %v1471 = vtanh.pop %v1469
        %v1472 = vmul.f32 %v1396, %v1470
        %v1473 = vmul.f32 %v1396, %v1471
        %v1474 = vrot.slane %v1472, 4
        %v1475 = vadd.f32 %v1472, %v1474
        %v1476 = vrot.slane %v1475, 2
        %v1477 = vadd.f32 %v1475, %v1476
        %v1478 = vrot.slane %v1477, 1
        %v1479 = vadd.f32 %v1477, %v1478
        %v1480 = vrot.slane %v1473, 4
        %v1481 = vadd.f32 %v1473, %v1480
        %v1482 = vrot.slane %v1481, 2
        %v1483 = vadd.f32 %v1481, %v1482
        %v1484 = vrot.slane %v1483, 1
        %v1485 = vadd.f32 %v1483, %v1484
        %v1486 = vadd.f32 %v1479, %v1407
        %v1487 = vadd.f32 %v1485, %v1407
        %v1488 = vadd.f32 %v1087, %v1388
        %v1489 = vadd.f32 %v1089, %v1390
        %v1490 = vtanh.pop %v1488
        %v1491 = vtanh.pop %v1489
        %v1492 = vmul.f32 %v1396, %v1490
        %v1493 = vmul.f32 %v1396, %v1491
        %v1494 = vrot.slane %v1492, 4
        %v1495 = vadd.f32 %v1492, %v1494
        %v1496 = vrot.slane %v1495, 2
        %v1497 = vadd.f32 %v1495, %v1496
        %v1498 = vrot.slane %v1497, 1
        %v1499 = vadd.f32 %v1497, %v1498
        %v1500 = vrot.slane %v1493, 4
        %v1501 = vadd.f32 %v1493, %v1500
        %v1502 = vrot.slane %v1501, 2
        %v1503 = vadd.f32 %v1501, %v1502
        %v1504 = vrot.slane %v1503, 1
        %v1505 = vadd.f32 %v1503, %v1504
        %v1506 = vadd.f32 %v1499, %v1407
        %v1507 = vadd.f32 %v1505, %v1407
        %v1508 = vadd.f32 %v1158, %v1388
        %v1509 = vadd.f32 %v1160, %v1390
        %v1510 = vtanh.pop %v1508
        %v1511 = vtanh.pop %v1509
        %v1512 = vmul.f32 %v1396, %v1510
        %v1513 = vmul.f32 %v1396, %v1511
        %v1514 = vrot.slane %v1512, 4
        %v1515 = vadd.f32 %v1512, %v1514
        %v1516 = vrot.slane %v1515, 2
        %v1517 = vadd.f32 %v1515, %v1516
        %v1518 = vrot.slane %v1517, 1
        %v1519 = vadd.f32 %v1517, %v1518
        %v1520 = vrot.slane %v1513, 4
        %v1521 = vadd.f32 %v1513, %v1520
        %v1522 = vrot.slane %v1521, 2
        %v1523 = vadd.f32 %v1521, %v1522
        %v1524 = vrot.slane %v1523, 1
        %v1525 = vadd.f32 %v1523, %v1524
        %v1526 = vadd.f32 %v1519, %v1407
        %v1527 = vadd.f32 %v1525, %v1407
        %v1528 = vadd.f32 %v1229, %v1388
        %v1529 = vadd.f32 %v1231, %v1390
        %v1530 = vtanh.pop %v1528
        %v1531 = vtanh.pop %v1529
        %v1532 = vmul.f32 %v1396, %v1530
        %v1533 = vmul.f32 %v1396, %v1531
        %v1534 = vrot.slane %v1532, 4
        %v1535 = vadd.f32 %v1532, %v1534
        %v1536 = vrot.slane %v1535, 2
        %v1537 = vadd.f32 %v1535, %v1536
        %v1538 = vrot.slane %v1537, 1
        %v1539 = vadd.f32 %v1537, %v1538
        %v1540 = vrot.slane %v1533, 4
        %v1541 = vadd.f32 %v1533, %v1540
        %v1542 = vrot.slane %v1541, 2
        %v1543 = vadd.f32 %v1541, %v1542
        %v1544 = vrot.slane %v1543, 1
        %v1545 = vadd.f32 %v1543, %v1544
        %v1546 = vadd.f32 %v1539, %v1407
        %v1547 = vadd.f32 %v1545, %v1407
        %v1548 = vadd.f32 %v1300, %v1388
        %v1549 = vadd.f32 %v1302, %v1390
        %v1550 = vtanh.pop %v1548
        %v1551 = vtanh.pop %v1549
        %v1552 = vmul.f32 %v1396, %v1550
        %v1553 = vmul.f32 %v1396, %v1551
        %v1554 = vrot.slane %v1552, 4
        %v1555 = vadd.f32 %v1552, %v1554
        %v1556 = vrot.slane %v1555, 2
        %v1557 = vadd.f32 %v1555, %v1556
        %v1558 = vrot.slane %v1557, 1
        %v1559 = vadd.f32 %v1557, %v1558
        %v1560 = vrot.slane %v1553, 4
        %v1561 = vadd.f32 %v1553, %v1560
        %v1562 = vrot.slane %v1561, 2
        %v1563 = vadd.f32 %v1561, %v1562
        %v1564 = vrot.slane %v1563, 1
        %v1565 = vadd.f32 %v1563, %v1564
        %v1566 = vadd.f32 %v1559, %v1407
        %v1567 = vadd.f32 %v1565, %v1407
        %v1568 = vmax.f32 %v1426, %v1446
        %v1569 = vmax.f32 %v1427, %v1447
        %v1570 = vmax.f32 %v1568, %v1466
        %v1571 = vmax.f32 %v1569, %v1467
        %v1572 = vmax.f32 %v1570, %v1486
        %v1573 = vmax.f32 %v1571, %v1487
        %v1574 = vmax.f32 %v1572, %v1506
        %v1575 = vmax.f32 %v1573, %v1507
        %v1576 = vmax.f32 %v1574, %v1526
        %v1577 = vmax.f32 %v1575, %v1527
        %v1578 = vmax.f32 %v1576, %v1546
        %v1579 = vmax.f32 %v1577, %v1547
        %v1580 = vmax.f32 %v1578, %v1566
        %v1581 = vmax.f32 %v1579, %v1567
        %v1582 = vsub.f32 %v1426, %v1580
        %v1583 = vsub.f32 %v1427, %v1581
        %v1584 = vmul.f32 %v1582, 1.442695
        %v1585 = vpow.pop %v1584
        %v1586 = vmul.f32 %v1583, 1.442695
        %v1587 = vpow.pop %v1586
        %v1588 = vadd.f32 %v1585, 0.0
        %v1589 = vadd.f32 %v1587, 0.0
        %v1590 = vmul.f32 %v1585, %v714
        %v1591 = vmul.f32 %v1587, %v715
        %v1592 = vadd.f32 %v1590, 0.0
        %v1593 = vadd.f32 %v1591, 0.0
        %v1594 = vsub.f32 %v1446, %v1580
        %v1595 = vsub.f32 %v1447, %v1581
        %v1596 = vmul.f32 %v1594, 1.442695
        %v1597 = vpow.pop %v1596
        %v1598 = vmul.f32 %v1595, 1.442695
        %v1599 = vpow.pop %v1598
        %v1600 = vadd.f32 %v1588, %v1597
        %v1601 = vadd.f32 %v1589, %v1599
        %v1602 = vmul.f32 %v1597, %v716
        %v1603 = vmul.f32 %v1599, %v717
        %v1604 = vadd.f32 %v1592, %v1602
        %v1605 = vadd.f32 %v1593, %v1603
        %v1606 = vsub.f32 %v1466, %v1580
        %v1607 = vsub.f32 %v1467, %v1581
        %v1608 = vmul.f32 %v1606, 1.442695
        %v1609 = vpow.pop %v1608
        %v1610 = vmul.f32 %v1607, 1.442695
        %v1611 = vpow.pop %v1610
        %v1612 = vadd.f32 %v1600, %v1609
        %v1613 = vadd.f32 %v1601, %v1611
        %v1614 = vmul.f32 %v1609, %v718
        %v1615 = vmul.f32 %v1611, %v719
        %v1616 = vadd.f32 %v1604, %v1614
        %v1617 = vadd.f32 %v1605, %v1615
        %v1618 = vsub.f32 %v1486, %v1580
        %v1619 = vsub.f32 %v1487, %v1581
        %v1620 = vmul.f32 %v1618, 1.442695
        %v1621 = vpow.pop %v1620
        %v1622 = vmul.f32 %v1619, 1.442695
        %v1623 = vpow.pop %v1622
        %v1624 = vadd.f32 %v1612, %v1621
        %v1625 = vadd.f32 %v1613, %v1623
        %v1626 = vmul.f32 %v1621, %v720
        %v1627 = vmul.f32 %v1623, %v721
        %v1628 = vadd.f32 %v1616, %v1626
        %v1629 = vadd.f32 %v1617, %v1627
        %v1630 = vsub.f32 %v1506, %v1580
        %v1631 = vsub.f32 %v1507, %v1581
        %v1632 = vmul.f32 %v1630, 1.442695
        %v1633 = vpow.pop %v1632
        %v1634 = vmul.f32 %v1631, 1.442695
        %v1635 = vpow.pop %v1634
        %v1636 = vadd.f32 %v1624, %v1633
        %v1637 = vadd.f32 %v1625, %v1635
        %v1638 = vmul.f32 %v1633, %v722
        %v1639 = vmul.f32 %v1635, %v723
        %v1640 = vadd.f32 %v1628, %v1638
        %v1641 = vadd.f32 %v1629, %v1639
        %v1642 = vsub.f32 %v1526, %v1580
        %v1643 = vsub.f32 %v1527, %v1581
        %v1644 = vmul.f32 %v1642, 1.442695
        %v1645 = vpow.pop %v1644
        %v1646 = vmul.f32 %v1643, 1.442695
        %v1647 = vpow.pop %v1646
        %v1648 = vadd.f32 %v1636, %v1645
        %v1649 = vadd.f32 %v1637, %v1647
        %v1650 = vmul.f32 %v1645, %v724
        %v1651 = vmul.f32 %v1647, %v725
        %v1652 = vadd.f32 %v1640, %v1650
        %v1653 = vadd.f32 %v1641, %v1651
        %v1654 = vsub.f32 %v1546, %v1580
        %v1655 = vsub.f32 %v1547, %v1581
        %v1656 = vmul.f32 %v1654, 1.442695
        %v1657 = vpow.pop %v1656
        %v1658 = vmul.f32 %v1655, 1.442695
        %v1659 = vpow.pop %v1658
        %v1660 = vadd.f32 %v1648, %v1657
        %v1661 = vadd.f32 %v1649, %v1659
        %v1662 = vmul.f32 %v1657, %v726
        %v1663 = vmul.f32 %v1659, %v727
        %v1664 = vadd.f32 %v1652, %v1662
        %v1665 = vadd.f32 %v1653, %v1663
        %v1666 = vsub.f32 %v1566, %v1580
        %v1667 = vsub.f32 %v1567, %v1581
        %v1668 = vmul.f32 %v1666, 1.442695
        %v1669 = vpow.pop %v1668
        %v1670 = vmul.f32 %v1667, 1.442695
        %v1671 = vpow.pop %v1670
        %v1672 = vadd.f32 %v1660, %v1669
        %v1673 = vadd.f32 %v1661, %v1671
        %v1674 = vmul.f32 %v1669, %v728
        %v1675 = vmul.f32 %v1671, %v729
        %v1676 = vadd.f32 %v1664, %v1674
        %v1677 = vadd.f32 %v1665, %v1675
        %v1678 = vrcp.pop %v1672
        %v1679 = vrcp.pop %v1673
        %v1680 = vmul.f32 %v1676, %v1678
        %v1681 = vmul.f32 %v1677, %v1679
        %1682 = vst [vmem:[#allocation2] sm:$0xff] %v1680
        %1683 = vst [vmem:[#allocation2 + $0x8] sm:$0xff] %v1681
        %v1685 = vcombine.high %v711, %v711
        %1687 = vst [vmem:[#allocation2 + $0x10] sm:$0xf] %v711
        %1688 = vst [vmem:[#allocation2 + $0x18] sm:$0xf] %v1685
        %v1689 = vcombine.low %v712, %v712
        %1691 = vst [vmem:[#allocation2 + $0x10] sm:$0xf0] %v1689
        %1692 = vst [vmem:[#allocation2 + $0x18] sm:$0xf0] %v712
        %v1693 = vld [vmem:[#allocation2] sm:$0xff]
        %v1694 = vld [vmem:[#allocation2 + $0x8] sm:$0xff]
        %v1695 = vld [vmem:[#allocation2 + $0x10] sm:$0xff]
        %v1696 = vld [vmem:[#allocation2 + $0x18] sm:$0xff]
        %v1697 = vpack.c.bf16 %v1695, %v1693
        %v1698 = vpack.c.bf16 %v1696, %v1694
        %1700 = vrot.lane.b32.xlu0 %v1698, 17
        %v1701 = vpop.permute.xlu0 %1700
        %1703 = vrot.lane.b32.xlu0 %v1697, 17
        %v1704 = vpop.permute.xlu0 %1703
        %vm1705 = vcmask 138240
        %v1706 = vsel %vm1705, %v1704, %v1701
        %vm1708 = vcmask 138240
        %v1711 = vsel %vm1708, %v1701, %v1704
        %v1713 = vld [vmem:[%s14] sm:$0x11]
        %v1715 = vunpack.c.l.b16 %v1713
        %v1716 = vunpack.c.h.b16 %v1713
        %v1717 = vpack.c.b16 %v1715, %v1715
        %v1718 = vpack.c.b16 %v1716, %v1716
        %v1720 = vpack.i.b16 %v1717, %v1717
        %v1722 = vlaneseq
        %v1723 = vshrl.u32 %v1722, 7
        %v1724 = vsub.s32 0, %v1723
        %v1725 = vrot.slane %v1720, %v1724
        %v1727 = vpack.i.b16 %v1718, %v1718
        %v1729 = vlaneseq
        %v1730 = vshrl.u32 %v1729, 7
        %v1731 = vsub.s32 0, %v1730
        %v1732 = vrot.slane %v1727, %v1731
        %v1733 = vmul.bf16 %v1711, %v1725
        %v1734 = vmul.bf16 %v1706, %v1732
        %v1737 = vunpack.c.l.b16 %v1733
        %v1738 = vunpack.c.l.b16 %v1734
        %v1739 = vunpack.c.h.b16 %v1733
        %v1740 = vunpack.c.h.b16 %v1734
        %v1741 = vpack.c.b16 %v1738, %v1737
        %v1742 = vpack.c.b16 %v1740, %v1739
        %1745 = vst [vmem:[#allocation3] sm:$0xff] %v1741
        %1746 = vst [vmem:[#allocation3 + $0x8] sm:$0xff] %v1742
        %1747 = vrot.lane.b32.xlu0 %v1698, 16
        %v1748 = vpop.permute.xlu0 %1747
        %1749 = vrot.lane.b32.xlu0 %v1697, 16
        %v1750 = vpop.permute.xlu0 %1749
        %vm1751 = vcmask 130048
        %v1752 = vsel %vm1751, %v1750, %v1748
        %vm1754 = vcmask 130048
        %v1757 = vsel %vm1754, %v1748, %v1750
        %v1759 = vld [vmem:[%s14] sm:$0x11]
        %v1761 = vunpack.c.l.b16 %v1759
        %v1762 = vunpack.c.h.b16 %v1759
        %v1763 = vpack.c.b16 %v1761, %v1761
        %v1764 = vpack.c.b16 %v1762, %v1762
        %v1766 = vshrl.u32 %v1763, 16
        %v1767 = vpack.i.b16 %v1766, %v1766
        %v1769 = vlaneseq
        %v1770 = vshrl.u32 %v1769, 7
        %v1771 = vsub.s32 0, %v1770
        %v1772 = vrot.slane %v1767, %v1771
        %v1774 = vshrl.u32 %v1764, 16
        %v1775 = vpack.i.b16 %v1774, %v1774
        %v1777 = vlaneseq
        %v1778 = vshrl.u32 %v1777, 7
        %v1779 = vsub.s32 0, %v1778
        %v1780 = vrot.slane %v1775, %v1779
        %v1781 = vmul.bf16 %v1757, %v1772
        %v1782 = vmul.bf16 %v1752, %v1780
        %v1785 = vunpack.c.l.b16 %v1781
        %v1786 = vunpack.c.l.b16 %v1782
        %v1787 = vunpack.c.h.b16 %v1781
        %v1788 = vunpack.c.h.b16 %v1782
        %v1789 = vpack.c.b16 %v1786, %v1785
        %v1790 = vpack.c.b16 %v1788, %v1787
        %1793 = vst [vmem:[#allocation3 + $0x10] sm:$0xff] %v1789
        %1794 = vst [vmem:[#allocation3 + $0x18] sm:$0xff] %v1790
        %1795 = vrot.lane.b32.xlu0 %v1698, 15
        %v1796 = vpop.permute.xlu0 %1795
        %1797 = vrot.lane.b32.xlu0 %v1697, 15
        %v1798 = vpop.permute.xlu0 %1797
        %vm1799 = vcmask 121856
        %v1800 = vsel %vm1799, %v1798, %v1796
        %vm1802 = vcmask 121856
        %v1805 = vsel %vm1802, %v1796, %v1798
        %v1807 = vld [vmem:[%s14] sm:$0x22]
        %v1809 = vunpack.c.l.b16 %v1807
        %v1810 = vunpack.c.h.b16 %v1807
        %v1811 = vpack.c.b16 %v1809, %v1809
        %v1812 = vpack.c.b16 %v1810, %v1810
        %v1814 = vpack.i.b16 %v1811, %v1811
        %v1816 = vlaneseq
        %v1817 = vshrl.u32 %v1816, 7
        %v1818 = vsub.s32 1, %v1817
        %v1819 = vrot.slane %v1814, %v1818
        %v1821 = vpack.i.b16 %v1812, %v1812
        %v1823 = vlaneseq
        %v1824 = vshrl.u32 %v1823, 7
        %v1825 = vsub.s32 1, %v1824
        %v1826 = vrot.slane %v1821, %v1825
        %v1827 = vmul.bf16 %v1805, %v1819
        %v1828 = vmul.bf16 %v1800, %v1826
        %v1831 = vunpack.c.l.b16 %v1827
        %v1832 = vunpack.c.l.b16 %v1828
        %v1833 = vunpack.c.h.b16 %v1827
        %v1834 = vunpack.c.h.b16 %v1828
        %v1835 = vpack.c.b16 %v1832, %v1831
        %v1836 = vpack.c.b16 %v1834, %v1833
        %1839 = vst [vmem:[#allocation3 + $0x20] sm:$0xff] %v1835
        %1840 = vst [vmem:[#allocation3 + $0x28] sm:$0xff] %v1836
        %1841 = vrot.lane.b32.xlu0 %v1698, 1
        %v1842 = vpop.permute.xlu0 %1841
        %1843 = vrot.lane.b32.xlu0 %v1697, 1
        %v1844 = vpop.permute.xlu0 %1843
        %vm1845 = vcmask 7168
        %v1846 = vsel %vm1845, %v1844, %v1842
        %vm1848 = vcmask 7168
        %v1851 = vsel %vm1848, %v1842, %v1844
        %v1853 = vld [vmem:[%s14] sm:$0x22]
        %v1855 = vunpack.c.l.b16 %v1853
        %v1856 = vunpack.c.h.b16 %v1853
        %v1857 = vpack.c.b16 %v1855, %v1855
        %v1858 = vpack.c.b16 %v1856, %v1856
        %v1860 = vshrl.u32 %v1857, 16
        %v1861 = vpack.i.b16 %v1860, %v1860
        %v1863 = vlaneseq
        %v1864 = vshrl.u32 %v1863, 7
        %v1865 = vsub.s32 1, %v1864
        %v1866 = vrot.slane %v1861, %v1865
        %v1868 = vshrl.u32 %v1858, 16
        %v1869 = vpack.i.b16 %v1868, %v1868
        %v1871 = vlaneseq
        %v1872 = vshrl.u32 %v1871, 7
        %v1873 = vsub.s32 1, %v1872
        %v1874 = vrot.slane %v1869, %v1873
        %v1875 = vmul.bf16 %v1851, %v1866
        %v1876 = vmul.bf16 %v1846, %v1874
        %v1879 = vunpack.c.l.b16 %v1875
        %v1880 = vunpack.c.l.b16 %v1876
        %v1881 = vunpack.c.h.b16 %v1875
        %v1882 = vunpack.c.h.b16 %v1876
        %v1883 = vpack.c.b16 %v1880, %v1879
        %v1884 = vpack.c.b16 %v1882, %v1881
        %1887 = vst [vmem:[#allocation3 + $0x30] sm:$0xff] %v1883
        %1888 = vst [vmem:[#allocation3 + $0x38] sm:$0xff] %v1884
        %v1889 = vld [vmem:[%s14] sm:$0x44]
        %v1891 = vunpack.c.l.b16 %v1889
        %v1892 = vunpack.c.h.b16 %v1889
        %v1893 = vpack.c.b16 %v1891, %v1891
        %v1894 = vpack.c.b16 %v1892, %v1892
        %v1896 = vpack.i.b16 %v1893, %v1893
        %v1898 = vlaneseq
        %v1899 = vshrl.u32 %v1898, 7
        %v1900 = vsub.s32 2, %v1899
        %v1901 = vrot.slane %v1896, %v1900
        %v1903 = vpack.i.b16 %v1894, %v1894
        %v1905 = vlaneseq
        %v1906 = vshrl.u32 %v1905, 7
        %v1907 = vsub.s32 2, %v1906
        %v1908 = vrot.slane %v1903, %v1907
        %v1909 = vmul.bf16 %v1697, %v1901
        %v1910 = vmul.bf16 %v1698, %v1908
        %v1913 = vunpack.c.l.b16 %v1909
        %v1914 = vunpack.c.l.b16 %v1910
        %v1915 = vunpack.c.h.b16 %v1909
        %v1916 = vunpack.c.h.b16 %v1910
        %v1917 = vpack.c.b16 %v1914, %v1913
        %v1918 = vpack.c.b16 %v1916, %v1915
        %1921 = vst [vmem:[#allocation3 + $0x40] sm:$0xff] %v1917
        %1922 = vst [vmem:[#allocation3 + $0x48] sm:$0xff] %v1918
        %1923 = vrot.lane.b32.xlu0 %v1697, 127
        %v1924 = vpop.permute.xlu0 %1923
        %1925 = vrot.lane.b32.xlu0 %v1698, 127
        %v1926 = vpop.permute.xlu0 %1925
        %vm1927 = vcmask 1039360
        %v1928 = vsel %vm1927, %v1924, %v1926
        %vm1930 = vcmask 1039360
        %v1933 = vsel %vm1930, %v1926, %v1924
        %v1935 = vld [vmem:[%s14] sm:$0x44]
        %v1937 = vunpack.c.l.b16 %v1935
        %v1938 = vunpack.c.h.b16 %v1935
        %v1939 = vpack.c.b16 %v1937, %v1937
        %v1940 = vpack.c.b16 %v1938, %v1938
        %v1942 = vshrl.u32 %v1939, 16
        %v1943 = vpack.i.b16 %v1942, %v1942
        %v1945 = vlaneseq
        %v1946 = vshrl.u32 %v1945, 7
        %v1947 = vsub.s32 2, %v1946
        %v1948 = vrot.slane %v1943, %v1947
        %v1950 = vshrl.u32 %v1940, 16
        %v1951 = vpack.i.b16 %v1950, %v1950
        %v1953 = vlaneseq
        %v1954 = vshrl.u32 %v1953, 7
        %v1955 = vsub.s32 2, %v1954
        %v1956 = vrot.slane %v1951, %v1955
        %v1957 = vmul.bf16 %v1928, %v1948
        %v1958 = vmul.bf16 %v1933, %v1956
        %v1961 = vunpack.c.l.b16 %v1957
        %v1962 = vunpack.c.l.b16 %v1958
        %v1963 = vunpack.c.h.b16 %v1957
        %v1964 = vunpack.c.h.b16 %v1958
        %v1965 = vpack.c.b16 %v1962, %v1961
        %v1966 = vpack.c.b16 %v1964, %v1963
        %1969 = vst [vmem:[#allocation3 + $0x50] sm:$0xff] %v1965
        %1970 = vst [vmem:[#allocation3 + $0x58] sm:$0xff] %v1966
        %1971 = vrot.lane.b32.xlu0 %v1697, 113
        %v1972 = vpop.permute.xlu0 %1971
        %1973 = vrot.lane.b32.xlu0 %v1698, 113
        %v1974 = vpop.permute.xlu0 %1973
        %vm1975 = vcmask 924672
        %v1976 = vsel %vm1975, %v1972, %v1974
        %vm1978 = vcmask 924672
        %v1981 = vsel %vm1978, %v1974, %v1972
        %v1983 = vld [vmem:[%s14] sm:$0x88]
        %v1985 = vunpack.c.l.b16 %v1983
        %v1986 = vunpack.c.h.b16 %v1983
        %v1987 = vpack.c.b16 %v1985, %v1985
        %v1988 = vpack.c.b16 %v1986, %v1986
        %v1990 = vpack.i.b16 %v1987, %v1987
        %v1992 = vlaneseq
        %v1993 = vshrl.u32 %v1992, 7
        %v1994 = vsub.s32 3, %v1993
        %v1995 = vrot.slane %v1990, %v1994
        %v1997 = vpack.i.b16 %v1988, %v1988
        %v1999 = vlaneseq
        %v2000 = vshrl.u32 %v1999, 7
        %v2001 = vsub.s32 3, %v2000
        %v2002 = vrot.slane %v1997, %v2001
        %v2003 = vmul.bf16 %v1976, %v1995
        %v2004 = vmul.bf16 %v1981, %v2002
        %v2007 = vunpack.c.l.b16 %v2003
        %v2008 = vunpack.c.l.b16 %v2004
        %v2009 = vunpack.c.h.b16 %v2003
        %v2010 = vunpack.c.h.b16 %v2004
        %v2011 = vpack.c.b16 %v2008, %v2007
        %v2012 = vpack.c.b16 %v2010, %v2009
        %2015 = vst [vmem:[#allocation3 + $0x60] sm:$0xff] %v2011
        %2016 = vst [vmem:[#allocation3 + $0x68] sm:$0xff] %v2012
        %2017 = vrot.lane.b32.xlu0 %v1697, 112
        %v2018 = vpop.permute.xlu0 %2017
        %2019 = vrot.lane.b32.xlu0 %v1698, 112
        %v2020 = vpop.permute.xlu0 %2019
        %vm2021 = vcmask 916480
        %v2022 = vsel %vm2021, %v2018, %v2020
        %vm2024 = vcmask 916480
        %v2027 = vsel %vm2024, %v2020, %v2018
        %v2029 = vld [vmem:[%s14] sm:$0x88]
        %v2031 = vunpack.c.l.b16 %v2029
        %v2032 = vunpack.c.h.b16 %v2029
        %v2033 = vpack.c.b16 %v2031, %v2031
        %v2034 = vpack.c.b16 %v2032, %v2032
        %v2036 = vshrl.u32 %v2033, 16
        %v2037 = vpack.i.b16 %v2036, %v2036
        %v2039 = vlaneseq
        %v2040 = vshrl.u32 %v2039, 7
        %v2041 = vsub.s32 3, %v2040
        %v2042 = vrot.slane %v2037, %v2041
        %v2044 = vshrl.u32 %v2034, 16
        %v2045 = vpack.i.b16 %v2044, %v2044
        %v2047 = vlaneseq
        %v2048 = vshrl.u32 %v2047, 7
        %v2049 = vsub.s32 3, %v2048
        %v2050 = vrot.slane %v2045, %v2049
        %v2051 = vmul.bf16 %v2022, %v2042
        %v2052 = vmul.bf16 %v2027, %v2050
        %v2055 = vunpack.c.l.b16 %v2051
        %v2056 = vunpack.c.l.b16 %v2052
        %v2057 = vunpack.c.h.b16 %v2051
        %v2058 = vunpack.c.h.b16 %v2052
        %v2059 = vpack.c.b16 %v2056, %v2055
        %v2060 = vpack.c.b16 %v2058, %v2057
        %2063 = vst [vmem:[#allocation3 + $0x70] sm:$0xff] %v2059
        %2064 = vst [vmem:[#allocation3 + $0x78] sm:$0xff] %v2060
        %2065 = vrot.lane.b32.xlu0 %v1697, 111
        %v2066 = vpop.permute.xlu0 %2065
        %2067 = vrot.lane.b32.xlu0 %v1698, 111
        %v2068 = vpop.permute.xlu0 %2067
        %vm2069 = vcmask 908288
        %v2070 = vsel %vm2069, %v2066, %v2068
        %vm2072 = vcmask 908288
        %v2075 = vsel %vm2072, %v2068, %v2066
        %v2077 = vld [vmem:[%s14 + $0x8] sm:$0x11]
        %v2079 = vunpack.c.l.b16 %v2077
        %v2080 = vunpack.c.h.b16 %v2077
        %v2081 = vpack.c.b16 %v2079, %v2079
        %v2082 = vpack.c.b16 %v2080, %v2080
        %v2084 = vpack.i.b16 %v2081, %v2081
        %v2086 = vlaneseq
        %v2087 = vshrl.u32 %v2086, 7
        %v2088 = vsub.s32 0, %v2087
        %v2089 = vrot.slane %v2084, %v2088
        %v2091 = vpack.i.b16 %v2082, %v2082
        %v2093 = vlaneseq
        %v2094 = vshrl.u32 %v2093, 7
        %v2095 = vsub.s32 0, %v2094
        %v2096 = vrot.slane %v2091, %v2095
        %v2097 = vmul.bf16 %v2070, %v2089
        %v2098 = vmul.bf16 %v2075, %v2096
        %v2101 = vunpack.c.l.b16 %v2097
        %v2102 = vunpack.c.l.b16 %v2098
        %v2103 = vunpack.c.h.b16 %v2097
        %v2104 = vunpack.c.h.b16 %v2098
        %v2105 = vpack.c.b16 %v2102, %v2101
        %v2106 = vpack.c.b16 %v2104, %v2103
        %2109 = vst [vmem:[#allocation3 + $0x80] sm:$0xff] %v2105
        %2110 = vst [vmem:[#allocation3 + $0x88] sm:$0xff] %v2106
        %v2111 = vld [vmem:[#allocation10] sm:$0xff]
        %v2112 = vld [vmem:[#allocation10 + $0x8] sm:$0xff]
        %v2113 = vld [vmem:[#allocation3] sm:$0xff]
        %v2114 = vld [vmem:[#allocation3 + $0x8] sm:$0xff]
        %v2115 = vld [vmem:[#allocation3 + $0x10] sm:$0xff]
        %v2116 = vld [vmem:[#allocation3 + $0x18] sm:$0xff]
        %v2117 = vld [vmem:[#allocation3 + $0x20] sm:$0xff]
        %v2118 = vld [vmem:[#allocation3 + $0x28] sm:$0xff]
        %v2119 = vld [vmem:[#allocation3 + $0x30] sm:$0xff]
        %v2120 = vld [vmem:[#allocation3 + $0x38] sm:$0xff]
        %v2121 = vld [vmem:[#allocation3 + $0x40] sm:$0xff]
        %v2122 = vld [vmem:[#allocation3 + $0x48] sm:$0xff]
        %v2123 = vld [vmem:[#allocation3 + $0x50] sm:$0xff]
        %v2124 = vld [vmem:[#allocation3 + $0x58] sm:$0xff]
        %v2125 = vld [vmem:[#allocation3 + $0x60] sm:$0xff]
        %v2126 = vld [vmem:[#allocation3 + $0x68] sm:$0xff]
        %v2127 = vld [vmem:[#allocation3 + $0x70] sm:$0xff]
        %v2128 = vld [vmem:[#allocation3 + $0x78] sm:$0xff]
        %v2129 = vld [vmem:[#allocation3 + $0x80] sm:$0xff]
        %v2130 = vld [vmem:[#allocation3 + $0x88] sm:$0xff]
        %v2131 = vld [vmem:[%s10] sm:$0xff]
        %v2132 = vld [vmem:[%s10 + $0x8] sm:$0xff]
        %2134 = vset.pattern.permute.xlu0 0
        %2135 = vperm.xlu0 %2134, %v2131
        %v2136 = vpop.permute.xlu0 %2135
        %2139 = vset.pattern.permute.xlu0 0
        %2140 = vperm.xlu0 %2139, %v2132
        %v2141 = vpop.permute.xlu0 %2140
        %v2145 = vunpack.c.l.b16 %v2111
        %v2146 = vunpack.c.h.b16 %v2111
        %v2147 = vunpack.c.l.b16 %v2112
        %v2148 = vunpack.c.h.b16 %v2112
        %v2149 = vpack.c.b16 %v2147, %v2145
        %v2150 = vpack.c.b16 %v2148, %v2146
        %v2170 = vunpack.c.l.b16 %v2113
        %v2171 = vunpack.c.h.b16 %v2113
        %v2172 = vunpack.c.l.b16 %v2114
        %v2173 = vunpack.c.h.b16 %v2114
        %v2174 = vunpack.c.l.b16 %v2115
        %v2175 = vunpack.c.h.b16 %v2115
        %v2176 = vunpack.c.l.b16 %v2116
        %v2177 = vunpack.c.h.b16 %v2116
        %v2178 = vunpack.c.l.b16 %v2117
        %v2179 = vunpack.c.h.b16 %v2117
        %v2180 = vunpack.c.l.b16 %v2118
        %v2181 = vunpack.c.h.b16 %v2118
        %v2182 = vunpack.c.l.b16 %v2119
        %v2183 = vunpack.c.h.b16 %v2119
        %v2184 = vunpack.c.l.b16 %v2120
        %v2185 = vunpack.c.h.b16 %v2120
        %v2186 = vunpack.c.l.b16 %v2121
        %v2187 = vunpack.c.h.b16 %v2121
        %v2188 = vunpack.c.l.b16 %v2122
        %v2189 = vunpack.c.h.b16 %v2122
        %v2190 = vunpack.c.l.b16 %v2123
        %v2191 = vunpack.c.h.b16 %v2123
        %v2192 = vunpack.c.l.b16 %v2124
        %v2193 = vunpack.c.h.b16 %v2124
        %v2194 = vunpack.c.l.b16 %v2125
        %v2195 = vunpack.c.h.b16 %v2125
        %v2196 = vunpack.c.l.b16 %v2126
        %v2197 = vunpack.c.h.b16 %v2126
        %v2198 = vunpack.c.l.b16 %v2127
        %v2199 = vunpack.c.h.b16 %v2127
        %v2200 = vunpack.c.l.b16 %v2128
        %v2201 = vunpack.c.h.b16 %v2128
        %v2202 = vunpack.c.l.b16 %v2129
        %v2203 = vunpack.c.h.b16 %v2129
        %v2204 = vunpack.c.l.b16 %v2130
        %v2205 = vunpack.c.h.b16 %v2130
        %v2206 = vpack.c.b16 %v2172, %v2170
        %v2207 = vpack.c.b16 %v2173, %v2171
        %v2208 = vpack.c.b16 %v2176, %v2174
        %v2209 = vpack.c.b16 %v2177, %v2175
        %v2210 = vpack.c.b16 %v2180, %v2178
        %v2211 = vpack.c.b16 %v2181, %v2179
        %v2212 = vpack.c.b16 %v2184, %v2182
        %v2213 = vpack.c.b16 %v2185, %v2183
        %v2214 = vpack.c.b16 %v2188, %v2186
        %v2215 = vpack.c.b16 %v2189, %v2187
        %v2216 = vpack.c.b16 %v2192, %v2190
        %v2217 = vpack.c.b16 %v2193, %v2191
        %v2218 = vpack.c.b16 %v2196, %v2194
        %v2219 = vpack.c.b16 %v2197, %v2195
        %v2220 = vpack.c.b16 %v2200, %v2198
        %v2221 = vpack.c.b16 %v2201, %v2199
        %v2222 = vpack.c.b16 %v2204, %v2202
        %v2223 = vpack.c.b16 %v2205, %v2203
        %v2243 = vsel %vm1754, %v2150, 0
        %2245 = vmatprep.subr.bf16.mxu0 %v2221
        %2246 = vmatpush1.bf16.msra.mxu0 %v2220
        %2247 = vmatprep.subr.bf16.mxu0 %v2219
        %2248 = vmatpush1.bf16.msra.mxu0 %v2218
        %2249 = vmatprep.subr.bf16.mxu0 %v2217
        %2250 = vmatpush1.bf16.msra.mxu0 %v2216
        %2251 = vmatprep.subr.bf16.mxu0 %v2215
        %2252 = vmatpush1.bf16.msra.mxu0 %v2214
        %2253 = vmatprep.subr.bf16.mxu0 %v2213
        %2254 = vmatpush1.bf16.msra.mxu0 %v2212
        %2255 = vmatprep.subr.bf16.mxu0 %v2211
        %2256 = vmatpush1.bf16.msra.mxu0 %v2210
        %2257 = vmatprep.subr.bf16.mxu0 %v2209
        %2258 = vmatpush1.bf16.msra.mxu0 %v2208
        %2259 = vmatprep.subr.bf16.mxu0 %v2207
        %2260 = vmatpush1.bf16.msra.mxu0 %v2206
        %2261 = vmatprep.subr.bf16.mxu0 0
        %2262 = vmatpush2.bf16.msra.mxu0 0
        %2263 = vmatprep.subr.bf16.mxu0 0
        %2264 = vmatpush2.bf16.msra.mxu0 0
        %2265 = vmatprep.subr.bf16.mxu0 0
        %2266 = vmatpush2.bf16.msra.mxu0 0
        %2267 = vmatprep.subr.bf16.mxu0 0
        %2268 = vmatpush2.bf16.msra.mxu0 0
        %2269 = vmatprep.subr.bf16.mxu0 0
        %2270 = vmatpush2.bf16.msra.mxu0 0
        %2271 = vmatprep.subr.bf16.mxu0 0
        %2272 = vmatpush2.bf16.msra.mxu0 0
        %2273 = vmatprep.subr.bf16.mxu0 0
        %2274 = vmatpush2.bf16.msra.mxu0 0
        %2275 = vmatprep.subr.bf16.mxu0 %v2223
        %2276 = vmatpush2.bf16.msra.mxu0 %v2222
        %2277 = vmatprep.mubr.bf16.mxu0 %v2243
        %2278 = vmatmul.mubr.bf16.gmra.mxu0 %v2149
        %v2279 = vpop.f32.mrf.mxu0
        %v2280 = vadd.f32 %v2136, %v2279
        %v2281 = vpop.f32.mrf.mxu0
        %v2282 = vadd.f32 %v2136, %v2281
        %v2283 = vpop.f32.mrf.mxu0
        %v2284 = vadd.f32 %v2141, %v2283
        %v2285 = vpop.f32.mrf.mxu0
        %v2286 = vadd.f32 %v2141, %v2285
        %2287 = vdwg.mxu0
        %v2288 = vld [vmem:[#allocation11] sm:$0xff]
        %v2289 = vmul.f32 %v2288, %v713
        %v2291 = vcombine.high %v2289, %v2289
        %v2293 = vadd.f32 %v2280, %v2289
        %v2294 = vadd.f32 %v2282, %v2291
        %v2295 = vsub.f32 0.0, %v2293
        %v2296 = vsub.f32 0.0, %v2294
        %v2297 = vmul.f32 %v2295, 1.442695
        %v2298 = vpow.pop %v2297
        %v2299 = vmul.f32 %v2296, 1.442695
        %v2300 = vpow.pop %v2299
        %v2301 = vadd.f32 %v2298, 1.0
        %v2302 = vadd.f32 %v2300, 1.0
        %v2303 = vrcp.pop %v2301
        %v2304 = vmul.f32 1.0, %v2303
        %v2305 = vrcp.pop %v2302
        %v2306 = vmul.f32 1.0, %v2305
        %v2307 = vld [vmem:[#allocation13] sm:$0xff]
        %v2308 = vmul.f32 %v2307, %v713
        %v2310 = vcombine.low %v2308, %v2308
        %v2312 = vadd.f32 %v2280, %v2310
        %v2313 = vadd.f32 %v2282, %v2308
        %v2314 = vsub.f32 0.0, %v2312
        %v2315 = vsub.f32 0.0, %v2313
        %v2316 = vmul.f32 %v2314, 1.442695
        %v2317 = vpow.pop %v2316
        %v2318 = vmul.f32 %v2315, 1.442695
        %v2319 = vpow.pop %v2318
        %v2320 = vadd.f32 %v2317, 1.0
        %v2321 = vadd.f32 %v2319, 1.0
        %v2322 = vrcp.pop %v2320
        %v2323 = vmul.f32 1.0, %v2322
        %v2324 = vrcp.pop %v2321
        %v2325 = vmul.f32 1.0, %v2324
        %v2327 = vcombine.low %v713, %v713
        %v2329 = vmul.f32 %v2323, %v2327
        %v2330 = vmul.f32 %v2325, %v713
        %v2331 = vtanh.pop %v2284
        %v2332 = vtanh.pop %v2286
        %v2333 = vmul.f32 %v2304, %v2331
        %v2334 = vmul.f32 %v2306, %v2332
        %v2337 = vrot.slane %v2333, 4
        %v2338 = vrot.slane %v2334, 4
        %v2341 = vadd.f32 %v2329, %v2337
        %v2342 = vadd.f32 %v2330, %v2338
        %v2343 = vld [vmem:[#allocation14] sm:$0xff]
        %v2346 = vcombine.high %v2341, %v2342
        %v2348 = vmul.f32 %v2343, %v2346
        %v2350 = vcombine.low %v2348, %v2348
        %v2352 = vadd.f32 %v2284, %v2350
        %v2353 = vadd.f32 %v2286, %v2348
        %v2354 = vsub.f32 0.0, %v2352
        %v2355 = vsub.f32 0.0, %v2353
        %v2356 = vmul.f32 %v2354, 1.442695
        %v2357 = vpow.pop %v2356
        %v2358 = vmul.f32 %v2355, 1.442695
        %v2359 = vpow.pop %v2358
        %v2360 = vadd.f32 %v2357, 1.0
        %v2361 = vadd.f32 %v2359, 1.0
        %v2362 = vrcp.pop %v2360
        %v2363 = vmul.f32 1.0, %v2362
        %v2364 = vrcp.pop %v2361
        %v2365 = vmul.f32 1.0, %v2364
        %v2366 = vtanh.pop %v2341
        %v2367 = vtanh.pop %v2342
        %v2368 = vmul.f32 %v2363, %v2366
        %v2369 = vmul.f32 %v2365, %v2367
        %v2372 = vrot.slane %v2368, 4
        %v2373 = vrot.slane %v2369, 4
        %2376 = vst [vmem:[%s680] sm:$0xf] %v2372
        %2377 = vst [vmem:[%s680 + $0x8] sm:$0xf] %v2373
        %v2380 = vrot.slane %v1680, 4
        %v2381 = vrot.slane %v1681, 4
        %2384 = vst [vmem:[%s680] sm:$0xf0] %v2380
        %2385 = vst [vmem:[%s680 + $0x8] sm:$0xf0] %v2381
        %2386 = vst [vmem:[%s680 + $0x10] sm:$0xf] %v2380
        %2387 = vst [vmem:[%s680 + $0x18] sm:$0xf] %v2381
        %v2388 = vcombine.low %v711, %v711
        %2390 = vst [vmem:[%s680 + $0x10] sm:$0xf0] %v2388
        %2391 = vst [vmem:[%s680 + $0x18] sm:$0xf0] %v711
        %v2392 = vcombine.high %v2368, %v2369
        %2394 = vst [vmem:[%s687] sm:$0xff] %v2392
        %2395 = vst [vmem:[%s694] sm:$0xff] %v2346
        %s2396 = sand.u32 %s386, 1
        %s2397 = scalar_lea.sflag [#allocation7], %s2396
        %s2398 = sand.u32 %s386, 1
        %s2399 = smul.addr %s2398, 32
        %s2400 = scalar_lea.vmem [#allocation16], %s2399
        %s2401 = sand.u32 %s43, 1
        %s2402 = scalar_lea.sflag [#allocation18], %s2401
        %s2403 = sand.u32 %s412, 1
        %s2404 = smul.addr %s2403, 8
        %s2405 = scalar_lea.vmem [#allocation17], %s2404
        %s2406 = sand.u32 %s43, 1
        %s2407 = scalar_lea.sflag [#allocation18], %s2406
        %s2408 = sand.u32 %s438, 1
        %s2409 = smul.addr %s2408, 8
        %s2410 = scalar_lea.vmem [#allocation19], %s2409
        // Predicated region
        $region105: #{tpu_custom_call.1} parent=79 // pred_check
          %p2411 = pneg %p396
        $region106: #{tpu_custom_call.1} parent=79 // pred_check_branch
          %2413 = sbr.rel (%p2411) target = $region108
        $region107: #{tpu_custom_call.1} parent=79 // pred_region
          %s2415 = ssub.s32 512, 512
          %2416 = vsyncadd %s2397, %s2415
          %s2417 = smul.addr %s43, 4
          %s2418 = smul.addr %s2417, 128
          %s2419 = scalar_lea.hbm %s15, %s2418
          %s2420 = sshll.u32 %s2400, 4
          %s2421 = int_to_ptr.vmem [resolvable:$true] %s2420
          %2426 = dma.vmem_to_hbm [thread:$0]  %s2421, 512, %s2419, %s2397, 256, 256, 16
        $region108: #{tpu_custom_call.1} parent=79 // pred_fallthru
          _
        // Predicated region
        $region109: #{tpu_custom_call.1} parent=79 // pred_check
          %p2427 = pneg %p422
        $region110: #{tpu_custom_call.1} parent=79 // pred_check_branch
          %2429 = sbr.rel (%p2427) target = $region112
        $region111: #{tpu_custom_call.1} parent=79 // pred_region
          %s2431 = ssub.s32 128, 128
          %2432 = vsyncadd %s2402, %s2431
          %s2433 = smul.addr %s43, 2
          %s2434 = smul.addr %s2433, 64
          %s2435 = scalar_lea.hbm %s16, %s2434
          %s2437 = sshll.u32 %s2405, 4
          %s2438 = int_to_ptr.vmem [resolvable:$true] %s2437
          %2440 = dma.vmem_to_hbm [thread:$0]  %s2438, 128, %s2435, %s2402
        $region112: #{tpu_custom_call.1} parent=79 // pred_fallthru
          _
        // Predicated region
        $region113: #{tpu_custom_call.1} parent=79 // pred_check
          %p2441 = pneg %p448
        $region114: #{tpu_custom_call.1} parent=79 // pred_check_branch
          %2443 = sbr.rel (%p2441) target = $region116
        $region115: #{tpu_custom_call.1} parent=79 // pred_region
          %s2445 = ssub.s32 128, 128
          %2446 = vsyncadd %s2407, %s2445
          %s2447 = smul.addr %s43, 2
          %s2448 = smul.addr %s2447, 64
          %s2449 = scalar_lea.hbm %s17, %s2448
          %s2451 = sshll.u32 %s2410, 4
          %s2452 = int_to_ptr.vmem [resolvable:$true] %s2451
          %2454 = dma.vmem_to_hbm [thread:$0]  %s2452, 128, %s2449, %s2407
        $region116: #{tpu_custom_call.1} parent=79 // pred_fallthru
          _
      $region80: #{tpu_custom_call.1} parent=5 // pred_fallthru
        _
      %p2455 = scmp.le.s32.totalorder 2, %s38
      // Predicated region
      $region117: #{tpu_custom_call.1} parent=5 // pred_check
        %p2456 = pneg %p2455
      $region118: #{tpu_custom_call.1} parent=5 // pred_check_branch
        %2458 = sbr.rel (%p2456) target = $region120
      $region119: #{tpu_custom_call.1} parent=5 // pred_region
        %s2459 = ssub.s32 %s38, 2
        // Predicated region
        $region121: #{tpu_custom_call.1} parent=119 // pred_check
          %p2460 = pneg %p402
        $region122: #{tpu_custom_call.1} parent=119 // pred_check_branch
          %2462 = sbr.rel (%p2460) target = $region124
        $region123: #{tpu_custom_call.1} parent=119 // pred_region
          %s2463 = sand.u32 %s387, 1
          %s2464 = scalar_lea.sflag [#allocation7], %s2463
          %s2465 = sand.u32 %s387, 1
          %s2466 = smul.addr %s2465, 32
          %s2467 = scalar_lea.vmem [#allocation16], %s2466
          %2468 = dma.done %s2464, 512
        $region124: #{tpu_custom_call.1} parent=119 // pred_fallthru
          _
        // Predicated region
        $region125: #{tpu_custom_call.1} parent=119 // pred_check
          %p2469 = pneg %p428
        $region126: #{tpu_custom_call.1} parent=119 // pred_check_branch
          %2471 = sbr.rel (%p2469) target = $region128
        $region127: #{tpu_custom_call.1} parent=119 // pred_region
          %s2472 = sand.u32 %s44, 1
          %s2473 = scalar_lea.sflag [#allocation18], %s2472
          %s2474 = sand.u32 %s413, 1
          %s2475 = smul.addr %s2474, 8
          %s2476 = scalar_lea.vmem [#allocation17], %s2475
          %2477 = dma.done %s2473, 128
        $region128: #{tpu_custom_call.1} parent=119 // pred_fallthru
          _
        // Predicated region
        $region129: #{tpu_custom_call.1} parent=119 // pred_check
          %p2478 = pneg %p454
        $region130: #{tpu_custom_call.1} parent=119 // pred_check_branch
          %2480 = sbr.rel (%p2478) target = $region132
        $region131: #{tpu_custom_call.1} parent=119 // pred_region
          %s2481 = sand.u32 %s44, 1
          %s2482 = scalar_lea.sflag [#allocation18], %s2481
          %s2483 = sand.u32 %s439, 1
          %s2484 = smul.addr %s2483, 8
          %s2485 = scalar_lea.vmem [#allocation19], %s2484
          %2486 = dma.done %s2482, 128
        $region132: #{tpu_custom_call.1} parent=119 // pred_fallthru
          _
      $region120: #{tpu_custom_call.1} parent=5 // pred_fallthru
        _
    $region6: #{tpu_custom_call.1} parent=1 // loop_footer
      %s42 = sadd.s32 1, %s38
    $region7: #{tpu_custom_call.1} parent=1 // loop_footer_branch
      %37 = sbr.rel target = $region3
    $region8: #{tpu_custom_call.1} parent=1 // loop_exit
      _
    %2487 = vsyncpa [#allocation6], 1
    %s2488 = scalar_lea.sflag [#allocation6], 1
    %2489 = vsyncpa %s2488, 1
    %2490 = vsyncpa [#allocation9], 1
    %2491 = vsyncpa [#allocation12], 1
    %2492 = vsyncpa [#allocation15], 1
    %2493 = vsyncpa [#allocation7], 1
    %s2494 = scalar_lea.sflag [#allocation7], 1
    %2495 = vsyncpa %s2494, 1
    %2496 = vsyncpa [#allocation18], 1
    %s2497 = scalar_lea.sflag [#allocation18], 1
    %2498 = vsyncpa %s2497, 1

</llo_original>
